<compile_context>
chip_gen: v7x
topology: tpu7x:2x2x1
jax: 0.10.0
libtpu: 0.0.40
codegen_flags: <defaults>
</compile_context>

<pallas_src>
import jax
import jax.numpy as jnp
from jax.experimental import pallas as pl
from jax.experimental.pallas import tpu as pltpu

_SQRT2_INV = 0.7071067811865476
_BN_EPS = 1e-5


def _gelu(v):
    # exact (erf-based) GELU — matches torch.nn.GELU() default
    return 0.5 * v * (1.0 + jax.lax.erf(v * _SQRT2_INV))


def patch_conv_block_bn_kernel(
    x_ref,                       # (Bt, H, W, C)
    w1_ref, b1_ref,              # (C, C) BN-folded W1^T, (1, C)
    cw_ref, cb_ref,              # (3, 3, C) depthwise weight, (1, C)
    fc1w_ref, fc1b_ref,          # (C, C4) SE fc1 W^T, (1, C4)
    fc2w_ref, fc2b_ref,          # (C4, C) SE fc2 W^T, (1, C)
    w2_ref, b2_ref,              # (C, C) layer_scale-folded W2^T, (1, C)
    out_ref,                     # (Bt, H, W, C)
):
    Bt, H, W, C = x_ref.shape
    x = x_ref[...]
    xf = x.reshape(Bt * H * W, C)

    # ---- BatchNorm (eval) + Conv1x1 (folded wrapper-side) + GELU ----
    y = jnp.dot(xf.astype(w1_ref.dtype), w1_ref[...],
                preferred_element_type=jnp.float32) + b1_ref[...]
    y = _gelu(y)
    y4 = y.reshape(Bt, H, W, C)

    # ---- depthwise 3x3 conv, padding=1 ----
    # W-shift pass: build the two column neighbours once (XLU roll + border mask).
    cw = cw_ref[...].astype(jnp.float32)                        # (3, 3, C)
    wi = jax.lax.broadcasted_iota(jnp.int32, (Bt, H, W, C), 2)  # column index
    y_l = jnp.where(wi == 0, 0.0, pltpu.roll(y4, 1, axis=2))          # y[..., w-1, :]
    y_r = jnp.where(wi == W - 1, 0.0, pltpu.roll(y4, W - 1, axis=2))  # y[..., w+1, :]

    def wtap(dh):  # q_dh[h, w] = sum_dw y[h, w+dw-1] * cw[dh, dw]
        return y_l * cw[dh, 0] + y4 * cw[dh, 1] + y_r * cw[dh, 2]

    # H-shift pass: conv[h] = q_0[h-1] + q_1[h] + q_2[h+1]  (zero padded rows).
    zero_row = jnp.zeros((Bt, 1, W, C), jnp.float32)
    conv = wtap(1) + cb_ref[...].astype(jnp.float32).reshape(1, 1, 1, C)
    conv = conv + jnp.concatenate([zero_row, wtap(0)[:, :H - 1]], axis=1)
    conv = conv + jnp.concatenate([wtap(2)[:, 1:], zero_row], axis=1)
    conv = _gelu(conv)

    # ---- SqueezeExcitation: per-image global mean -> fc1 -> ReLU -> fc2 -> Sigmoid ----
    s = jnp.mean(conv, axis=(1, 2))                             # (Bt, C)
    s1 = jnp.dot(s.astype(fc1w_ref.dtype), fc1w_ref[...],
                 preferred_element_type=jnp.float32) + fc1b_ref[...]
    s1 = jnp.maximum(s1, 0.0)
    s2 = jnp.dot(s1.astype(fc2w_ref.dtype), fc2w_ref[...],
                 preferred_element_type=jnp.float32) + fc2b_ref[...]
    s2 = jax.nn.sigmoid(s2)
    yse = conv * s2[:, None, None, :]

    # ---- Conv1x1 (layer_scale folded wrapper-side) + residual (drop_path = identity) ----
    z = jnp.dot(yse.reshape(Bt * H * W, C).astype(w2_ref.dtype), w2_ref[...],
                preferred_element_type=jnp.float32) + b2_ref[...]
    out = xf.astype(jnp.float32) + z
    out_ref[...] = out.reshape(Bt, H, W, C).astype(out_ref.dtype)


def patch_conv_block_bn(x_nchw, params, *, block_batch=None, eps=_BN_EPS):
    """x_nchw: (B, C, H, W), same layout as the PyTorch module."""
    B, C, H, W = x_nchw.shape
    C4 = params["fc1_w"].shape[0]

    # Pick Bt (images per grid step): enough rows to fill the MXU while keeping the
    # ~8 live f32 (rows, C) intermediates comfortably inside VMEM (<~24 MiB).
    if block_batch is None:
        rows_cap = max(512, 786432 // max(C, 1))
        bt_target = max(1, min(B, rows_cap // max(H * W, 1)))
        block_batch = 1
        for bt in range(bt_target, 0, -1):
            if B % bt == 0:
                block_batch = bt
                break
    Bt = block_batch
    assert B % Bt == 0, (B, Bt)

    # ---- wrapper-side (one-time) weight folding ----
    # BatchNorm (eval) -> per-channel affine: xn = x*s + t; fold into conv1.
    s = params["bn_g"] / jnp.sqrt(params["bn_var"] + eps)
    t = params["bn_b"] - params["bn_mean"] * s
    w1t = params["conv1_w"].T                                  # (Cin, Cout)
    w1_f = (s[:, None] * w1t).astype(params["conv1_w"].dtype)
    b1_f = (t @ w1t + params["conv1_b"]).astype(jnp.float32)[None, :]
    # layer_scale folded into conv2.
    ls = params["layer_scale"]
    w2t = params["conv2_w"].T
    w2_f = (w2t * ls[None, :]).astype(params["conv2_w"].dtype)
    b2_f = (params["conv2_b"] * ls).astype(jnp.float32)[None, :]
    # depthwise weight (C,3,3) -> (3,3,C); SE weights transposed to (in, out).
    cw = jnp.transpose(params["dw_w"], (1, 2, 0))
    cb = params["dw_b"].astype(jnp.float32)[None, :]
    fc1w = params["fc1_w"].T
    fc1b = params["fc1_b"].astype(jnp.float32)[None, :]
    fc2w = params["fc2_w"].T
    fc2b = params["fc2_b"].astype(jnp.float32)[None, :]

    x_nhwc = jnp.transpose(x_nchw, (0, 2, 3, 1))               # channels-last (lane-dense)

    def rep(shape):
        return pl.BlockSpec(shape, lambda b, _n=len(shape): (0,) * _n)

    grid_spec = pltpu.PrefetchScalarGridSpec(
        num_scalar_prefetch=0,
        grid=(B // Bt,),
        in_specs=[
            pl.BlockSpec((Bt, H, W, C), lambda b: (b, 0, 0, 0)),
            rep((C, C)), rep((1, C)),          # folded conv1 W^T, b
            rep((3, 3, C)), rep((1, C)),       # depthwise conv weight, bias
            rep((C, C4)), rep((1, C4)),        # SE fc1 W^T, b
            rep((C4, C)), rep((1, C)),         # SE fc2 W^T, b
            rep((C, C)), rep((1, C)),          # folded conv2 W^T, b
        ],
        out_specs=pl.BlockSpec((Bt, H, W, C), lambda b: (b, 0, 0, 0)),
    )
    out_nhwc = pl.pallas_call(
        patch_conv_block_bn_kernel,
        grid_spec=grid_spec,
        out_shape=jax.ShapeDtypeStruct((B, H, W, C), x_nhwc.dtype),
        compiler_params=pltpu.CompilerParams(
            dimension_semantics=("parallel",),
            vmem_limit_bytes=32 * 1024 * 1024,
        ),
    )(x_nhwc, w1_f, b1_f, cw, cb, fc1w, fc1b, fc2w, fc2b, w2_f, b2_f)
    return jnp.transpose(out_nhwc, (0, 3, 1, 2))


def reference(x, p, eps=_BN_EPS):
    """Pure-JAX reference mirroring the PyTorch forward (NCHW, eval mode)."""
    B, C, H, W = x.shape
    s = p["bn_g"] / jnp.sqrt(p["bn_var"] + eps)
    t = p["bn_b"] - p["bn_mean"] * s
    xn = x * s[None, :, None, None] + t[None, :, None, None]
    y = jnp.einsum("bchw,oc->bohw", xn, p["conv1_w"]) + p["conv1_b"][None, :, None, None]
    y = _gelu(y)
    w = p["dw_w"][:, None, :, :]                               # (C, 1, 3, 3)
    conv = jax.lax.conv_general_dilated(
        y, w, (1, 1), ((1, 1), (1, 1)),
        dimension_numbers=("NCHW", "OIHW", "NCHW"), feature_group_count=C)
    conv = _gelu(conv + p["dw_b"][None, :, None, None])
    se = jnp.mean(conv, axis=(2, 3))                           # (B, C)
    s1 = jnp.maximum(se @ p["fc1_w"].T + p["fc1_b"], 0.0)
    s2 = jax.nn.sigmoid(s1 @ p["fc2_w"].T + p["fc2_b"])
    yse = conv * s2[:, :, None, None]
    z = jnp.einsum("bchw,oc->bohw", yse, p["conv2_w"]) + p["conv2_b"][None, :, None, None]
    return x + z * p["layer_scale"][None, :, None, None]


if __name__ == "__main__":
    # Small but lane-dense test: embed_dim=128 (multiple of 128), SE hidden = 32.
    B, C, H, W = 4, 128, 8, 8
    C4 = C // 4
    f32 = jnp.float32
    key = jax.random.PRNGKey(0)
    ks = jax.random.split(key, 14)
    params = {
        "bn_g": 1.0 + 0.1 * jax.random.normal(ks[0], (C,), f32),
        "bn_b": 0.1 * jax.random.normal(ks[1], (C,), f32),
        "bn_mean": 0.1 * jax.random.normal(ks[2], (C,), f32),
        "bn_var": jnp.abs(jax.random.normal(ks[3], (C,), f32)) + 0.5,
        "conv1_w": 0.05 * jax.random.normal(ks[4], (C, C), f32),      # (out, in)
        "conv1_b": 0.02 * jax.random.normal(ks[5], (C,), f32),
        "dw_w": 0.1 * jax.random.normal(ks[6], (C, 3, 3), f32),       # depthwise (C,1,3,3) squeezed
        "dw_b": 0.02 * jax.random.normal(ks[7], (C,), f32),
        "fc1_w": 0.1 * jax.random.normal(ks[8], (C4, C), f32),        # (out, in)
        "fc1_b": jnp.zeros((C4,), f32),
        "fc2_w": 0.1 * jax.random.normal(ks[9], (C, C4), f32),        # (out, in)
        "fc2_b": jnp.zeros((C,), f32),
        "conv2_w": 0.05 * jax.random.normal(ks[10], (C, C), f32),     # (out, in)
        "conv2_b": 0.02 * jax.random.normal(ks[11], (C,), f32),
        # module default 1e-6 makes the branch numerically invisible; 1e-2 keeps the
        # test meaningful while preserving the semantics (it is just a parameter value)
        "layer_scale": jnp.full((C,), 1e-2, f32),
    }
    x = jax.random.normal(ks[12], (B, C, H, W), f32)

    out = jax.block_until_ready(patch_conv_block_bn(x, params, block_batch=2))
    ref = jax.block_until_ready(reference(x, params))

    assert out.shape == x.shape and out.dtype == x.dtype
    err = float(jnp.abs(out - ref).max())
    assert jnp.allclose(out, ref, rtol=1e-4, atol=1e-4), err
    print("KERNEL_OK")
</pallas_src>

<mosaic_0001>
module attributes {stable_mosaic.version = 11 : i64} {
  func.func @patch_conv_block_bn_kernel(%arg0: i32, %arg1: memref<2x8x8x128xf32, #tpu.memory_space<vmem>>, %arg2: memref<128x128xf32, #tpu.memory_space<vmem>>, %arg3: memref<1x128xf32, #tpu.memory_space<vmem>>, %arg4: memref<3x3x128xf32, #tpu.memory_space<vmem>>, %arg5: memref<1x128xf32, #tpu.memory_space<vmem>>, %arg6: memref<128x32xf32, #tpu.memory_space<vmem>>, %arg7: memref<1x32xf32, #tpu.memory_space<vmem>>, %arg8: memref<32x128xf32, #tpu.memory_space<vmem>>, %arg9: memref<1x128xf32, #tpu.memory_space<vmem>>, %arg10: memref<128x128xf32, #tpu.memory_space<vmem>>, %arg11: memref<1x128xf32, #tpu.memory_space<vmem>>, %arg12: memref<2x8x8x128xf32, #tpu.memory_space<vmem>>) attributes {dimension_semantics = [#tpu.dimension_semantics<parallel>], iteration_bounds = array<i64: 2>, scalar_prefetch = 0 : i64, scratch_operands = 0 : i64, tpu.core_type = #tpu.core_type<tc>, window_params = [{transform_indices = @transform_0, window_bounds = array<i64: 2, 8, 8, 128>}, {pipeline_mode = #tpu.pipeline_mode<synchronous>, transform_indices = @transform_1, window_bounds = array<i64: 128, 128>}, {pipeline_mode = #tpu.pipeline_mode<synchronous>, transform_indices = @transform_2, window_bounds = array<i64: 1, 128>}, {pipeline_mode = #tpu.pipeline_mode<synchronous>, transform_indices = @transform_3, window_bounds = array<i64: 3, 3, 128>}, {pipeline_mode = #tpu.pipeline_mode<synchronous>, transform_indices = @transform_4, window_bounds = array<i64: 1, 128>}, {pipeline_mode = #tpu.pipeline_mode<synchronous>, transform_indices = @transform_5, window_bounds = array<i64: 128, 32>}, {pipeline_mode = #tpu.pipeline_mode<synchronous>, transform_indices = @transform_6, window_bounds = array<i64: 1, 32>}, {pipeline_mode = #tpu.pipeline_mode<synchronous>, transform_indices = @transform_7, window_bounds = array<i64: 32, 128>}, {pipeline_mode = #tpu.pipeline_mode<synchronous>, transform_indices = @transform_8, window_bounds = array<i64: 1, 128>}, {pipeline_mode = #tpu.pipeline_mode<synchronous>, transform_indices = @transform_9, window_bounds = array<i64: 128, 128>}, {pipeline_mode = #tpu.pipeline_mode<synchronous>, transform_indices = @transform_10, window_bounds = array<i64: 1, 128>}, {transform_indices = @transform_11, window_bounds = array<i64: 2, 8, 8, 128>}]} {
    %c0 = arith.constant 0 : index
    %c0_0 = arith.constant 0 : index
    %c0_1 = arith.constant 0 : index
    %c0_2 = arith.constant 0 : index
    %0 = vector.load %arg1[%c0, %c0_0, %c0_1, %c0_2] : memref<2x8x8x128xf32, #tpu.memory_space<vmem>>, vector<2x8x8x128xf32>
    %1 = vector.shape_cast %0 : vector<2x8x8x128xf32> to vector<128x128xf32>
    %c0_3 = arith.constant 0 : index
    %c0_4 = arith.constant 0 : index
    %2 = vector.load %arg2[%c0_3, %c0_4] : memref<128x128xf32, #tpu.memory_space<vmem>>, vector<128x128xf32>
    %cst = arith.constant dense<0.000000e+00> : vector<128x128xf32>
    %3 = tpu.matmul %1, %2, %cst {dimension_numbers = #tpu.dot_dimension_numbers<[1], [0], [0], [1], [0, 0, 1, 1], [], []>} : vector<128x128xf32>, vector<128x128xf32>, vector<128x128xf32> -> vector<128x128xf32>
    %c0_5 = arith.constant 0 : index
    %c0_6 = arith.constant 0 : index
    %4 = vector.load %arg3[%c0_5, %c0_6] : memref<1x128xf32, #tpu.memory_space<vmem>>, vector<1x128xf32>
    %5 = vector.broadcast %4 : vector<1x128xf32> to vector<128x128xf32>
    %6 = arith.addf %3, %5 : vector<128x128xf32>
    %cst_7 = arith.constant 5.000000e-01 : f32
    %7 = vector.broadcast %cst_7 : f32 to vector<128x128xf32>
    %8 = arith.mulf %7, %6 : vector<128x128xf32>
    %cst_8 = arith.constant 0.707106769 : f32
    %9 = vector.broadcast %cst_8 : f32 to vector<128x128xf32>
    %10 = arith.mulf %6, %9 : vector<128x128xf32>
    %11 = math.erf %10 : vector<128x128xf32>
    %cst_9 = arith.constant 1.000000e+00 : f32
    %12 = vector.broadcast %cst_9 : f32 to vector<128x128xf32>
    %13 = arith.addf %12, %11 : vector<128x128xf32>
    %14 = arith.mulf %8, %13 : vector<128x128xf32>
    %15 = vector.shape_cast %14 : vector<128x128xf32> to vector<2x8x8x128xf32>
    %c0_10 = arith.constant 0 : index
    %c0_11 = arith.constant 0 : index
    %c0_12 = arith.constant 0 : index
    %16 = vector.load %arg4[%c0_10, %c0_11, %c0_12] : memref<3x3x128xf32, #tpu.memory_space<vmem>>, vector<3x3x128xf32>
    %17 = tpu.iota {dimensions = array<i32: 2>} : vector<2x8x8x128xi32>
    %c0_i32 = arith.constant 0 : i32
    %18 = vector.broadcast %c0_i32 : i32 to vector<2x8x8x128xi32>
    %19 = arith.cmpi eq, %17, %18 : vector<2x8x8x128xi32>
    %c1_i32 = arith.constant 1 : i32
    %20 = tpu.dynamic_rotate %15 by %c1_i32 dim 2 : vector<2x8x8x128xf32>, i32 -> vector<2x8x8x128xf32>
    %cst_13 = arith.constant 0.000000e+00 : f32
    %21 = vector.broadcast %cst_13 : f32 to vector<2x8x8x128xf32>
    %22 = arith.select %19, %21, %20 : vector<2x8x8x128xi1>, vector<2x8x8x128xf32>
    %c7_i32 = arith.constant 7 : i32
    %23 = vector.broadcast %c7_i32 : i32 to vector<2x8x8x128xi32>
    %24 = arith.cmpi eq, %17, %23 : vector<2x8x8x128xi32>
    %c7_i32_14 = arith.constant 7 : i32
    %25 = tpu.dynamic_rotate %15 by %c7_i32_14 dim 2 : vector<2x8x8x128xf32>, i32 -> vector<2x8x8x128xf32>
    %cst_15 = arith.constant 0.000000e+00 : f32
    %26 = vector.broadcast %cst_15 : f32 to vector<2x8x8x128xf32>
    %27 = arith.select %24, %26, %25 : vector<2x8x8x128xi1>, vector<2x8x8x128xf32>
    %cst_16 = arith.constant 0.000000e+00 : f32
    %28 = vector.broadcast %cst_16 : f32 to vector<2x1x8x128xf32>
    %29 = vector.extract_strided_slice %16 {offsets = [1, 0, 0], sizes = [1, 1, 128], strides = [1, 1, 1]} : vector<3x3x128xf32> to vector<1x1x128xf32>
    %30 = vector.shape_cast %29 : vector<1x1x128xf32> to vector<128xf32>
    %31 = vector.shape_cast %30 : vector<128xf32> to vector<1x1x1x128xf32>
    %32 = vector.broadcast %31 : vector<1x1x1x128xf32> to vector<2x8x8x128xf32>
    %33 = arith.mulf %22, %32 : vector<2x8x8x128xf32>
    %34 = vector.extract_strided_slice %16 {offsets = [1, 1, 0], sizes = [1, 1, 128], strides = [1, 1, 1]} : vector<3x3x128xf32> to vector<1x1x128xf32>
    %35 = vector.shape_cast %34 : vector<1x1x128xf32> to vector<128xf32>
    %36 = vector.shape_cast %35 : vector<128xf32> to vector<1x1x1x128xf32>
    %37 = vector.broadcast %36 : vector<1x1x1x128xf32> to vector<2x8x8x128xf32>
    %38 = arith.mulf %15, %37 : vector<2x8x8x128xf32>
    %39 = arith.addf %33, %38 : vector<2x8x8x128xf32>
    %40 = vector.extract_strided_slice %16 {offsets = [1, 2, 0], sizes = [1, 1, 128], strides = [1, 1, 1]} : vector<3x3x128xf32> to vector<1x1x128xf32>
    %41 = vector.shape_cast %40 : vector<1x1x128xf32> to vector<128xf32>
    %42 = vector.shape_cast %41 : vector<128xf32> to vector<1x1x1x128xf32>
    %43 = vector.broadcast %42 : vector<1x1x1x128xf32> to vector<2x8x8x128xf32>
    %44 = arith.mulf %27, %43 : vector<2x8x8x128xf32>
    %45 = arith.addf %39, %44 : vector<2x8x8x128xf32>
    %c0_17 = arith.constant 0 : index
    %c0_18 = arith.constant 0 : index
    %46 = vector.load %arg5[%c0_17, %c0_18] : memref<1x128xf32, #tpu.memory_space<vmem>>, vector<1x128xf32>
    %47 = vector.shape_cast %46 : vector<1x128xf32> to vector<1x1x1x128xf32>
    %48 = vector.broadcast %47 : vector<1x1x1x128xf32> to vector<2x8x8x128xf32>
    %49 = arith.addf %45, %48 : vector<2x8x8x128xf32>
    %50 = vector.extract_strided_slice %16 {offsets = [0, 0, 0], sizes = [1, 1, 128], strides = [1, 1, 1]} : vector<3x3x128xf32> to vector<1x1x128xf32>
    %51 = vector.shape_cast %50 : vector<1x1x128xf32> to vector<128xf32>
    %52 = vector.shape_cast %51 : vector<128xf32> to vector<1x1x1x128xf32>
    %53 = vector.broadcast %52 : vector<1x1x1x128xf32> to vector<2x8x8x128xf32>
    %54 = arith.mulf %22, %53 : vector<2x8x8x128xf32>
    %55 = vector.extract_strided_slice %16 {offsets = [0, 1, 0], sizes = [1, 1, 128], strides = [1, 1, 1]} : vector<3x3x128xf32> to vector<1x1x128xf32>
    %56 = vector.shape_cast %55 : vector<1x1x128xf32> to vector<128xf32>
    %57 = vector.shape_cast %56 : vector<128xf32> to vector<1x1x1x128xf32>
    %58 = vector.broadcast %57 : vector<1x1x1x128xf32> to vector<2x8x8x128xf32>
    %59 = arith.mulf %15, %58 : vector<2x8x8x128xf32>
    %60 = arith.addf %54, %59 : vector<2x8x8x128xf32>
    %61 = vector.extract_strided_slice %16 {offsets = [0, 2, 0], sizes = [1, 1, 128], strides = [1, 1, 1]} : vector<3x3x128xf32> to vector<1x1x128xf32>
    %62 = vector.shape_cast %61 : vector<1x1x128xf32> to vector<128xf32>
    %63 = vector.shape_cast %62 : vector<128xf32> to vector<1x1x1x128xf32>
    %64 = vector.broadcast %63 : vector<1x1x1x128xf32> to vector<2x8x8x128xf32>
    %65 = arith.mulf %27, %64 : vector<2x8x8x128xf32>
    %66 = arith.addf %60, %65 : vector<2x8x8x128xf32>
    %67 = vector.extract_strided_slice %66 {offsets = [0, 0, 0, 0], sizes = [2, 7, 8, 128], strides = [1, 1, 1, 1]} : vector<2x8x8x128xf32> to vector<2x7x8x128xf32>
    %68 = tpu.concatenate %28, %67 in 1 : vector<2x1x8x128xf32>, vector<2x7x8x128xf32> -> vector<2x8x8x128xf32>
    %69 = arith.addf %49, %68 : vector<2x8x8x128xf32>
    %70 = vector.extract_strided_slice %16 {offsets = [2, 0, 0], sizes = [1, 1, 128], strides = [1, 1, 1]} : vector<3x3x128xf32> to vector<1x1x128xf32>
    %71 = vector.shape_cast %70 : vector<1x1x128xf32> to vector<128xf32>
    %72 = vector.shape_cast %71 : vector<128xf32> to vector<1x1x1x128xf32>
    %73 = vector.broadcast %72 : vector<1x1x1x128xf32> to vector<2x8x8x128xf32>
    %74 = arith.mulf %22, %73 : vector<2x8x8x128xf32>
    %75 = vector.extract_strided_slice %16 {offsets = [2, 1, 0], sizes = [1, 1, 128], strides = [1, 1, 1]} : vector<3x3x128xf32> to vector<1x1x128xf32>
    %76 = vector.shape_cast %75 : vector<1x1x128xf32> to vector<128xf32>
    %77 = vector.shape_cast %76 : vector<128xf32> to vector<1x1x1x128xf32>
    %78 = vector.broadcast %77 : vector<1x1x1x128xf32> to vector<2x8x8x128xf32>
    %79 = arith.mulf %15, %78 : vector<2x8x8x128xf32>
    %80 = arith.addf %74, %79 : vector<2x8x8x128xf32>
    %81 = vector.extract_strided_slice %16 {offsets = [2, 2, 0], sizes = [1, 1, 128], strides = [1, 1, 1]} : vector<3x3x128xf32> to vector<1x1x128xf32>
    %82 = vector.shape_cast %81 : vector<1x1x128xf32> to vector<128xf32>
    %83 = vector.shape_cast %82 : vector<128xf32> to vector<1x1x1x128xf32>
    %84 = vector.broadcast %83 : vector<1x1x1x128xf32> to vector<2x8x8x128xf32>
    %85 = arith.mulf %27, %84 : vector<2x8x8x128xf32>
    %86 = arith.addf %80, %85 : vector<2x8x8x128xf32>
    %87 = vector.extract_strided_slice %86 {offsets = [0, 1, 0, 0], sizes = [2, 7, 8, 128], strides = [1, 1, 1, 1]} : vector<2x8x8x128xf32> to vector<2x7x8x128xf32>
    %88 = tpu.concatenate %87, %28 in 1 : vector<2x7x8x128xf32>, vector<2x1x8x128xf32> -> vector<2x8x8x128xf32>
    %89 = arith.addf %69, %88 : vector<2x8x8x128xf32>
    %cst_19 = arith.constant 5.000000e-01 : f32
    %90 = vector.broadcast %cst_19 : f32 to vector<2x8x8x128xf32>
    %91 = arith.mulf %90, %89 : vector<2x8x8x128xf32>
    %cst_20 = arith.constant 0.707106769 : f32
    %92 = vector.broadcast %cst_20 : f32 to vector<2x8x8x128xf32>
    %93 = arith.mulf %89, %92 : vector<2x8x8x128xf32>
    %94 = math.erf %93 : vector<2x8x8x128xf32>
    %cst_21 = arith.constant 1.000000e+00 : f32
    %95 = vector.broadcast %cst_21 : f32 to vector<2x8x8x128xf32>
    %96 = arith.addf %95, %94 : vector<2x8x8x128xf32>
    %97 = arith.mulf %91, %96 : vector<2x8x8x128xf32>
    %cst_22 = arith.constant dense<0.000000e+00> : vector<2x128xf32>
    %98 = vector.multi_reduction <add>, %97, %cst_22 [1, 2] : vector<2x8x8x128xf32> to vector<2x128xf32>
    %cst_23 = arith.constant 6.400000e+01 : f32
    %99 = vector.broadcast %cst_23 : f32 to vector<2x128xf32>
    %100 = arith.divf %98, %99 : vector<2x128xf32>
    %c0_24 = arith.constant 0 : index
    %c0_25 = arith.constant 0 : index
    %101 = vector.load %arg6[%c0_24, %c0_25] : memref<128x32xf32, #tpu.memory_space<vmem>>, vector<128x32xf32>
    %cst_26 = arith.constant dense<0.000000e+00> : vector<2x32xf32>
    %102 = tpu.matmul %100, %101, %cst_26 {dimension_numbers = #tpu.dot_dimension_numbers<[1], [0], [0], [1], [0, 0, 1, 1], [], []>} : vector<2x128xf32>, vector<128x32xf32>, vector<2x32xf32> -> vector<2x32xf32>
    %c0_27 = arith.constant 0 : index
    %c0_28 = arith.constant 0 : index
    %103 = vector.load %arg7[%c0_27, %c0_28] : memref<1x32xf32, #tpu.memory_space<vmem>>, vector<1x32xf32>
    %104 = vector.broadcast %103 : vector<1x32xf32> to vector<2x32xf32>
    %105 = arith.addf %102, %104 : vector<2x32xf32>
    %cst_29 = arith.constant 0.000000e+00 : f32
    %106 = vector.broadcast %cst_29 : f32 to vector<2x32xf32>
    %107 = arith.maximumf %105, %106 : vector<2x32xf32>
    %c0_30 = arith.constant 0 : index
    %c0_31 = arith.constant 0 : index
    %108 = vector.load %arg8[%c0_30, %c0_31] : memref<32x128xf32, #tpu.memory_space<vmem>>, vector<32x128xf32>
    %cst_32 = arith.constant dense<0.000000e+00> : vector<2x128xf32>
    %109 = tpu.matmul %107, %108, %cst_32 {dimension_numbers = #tpu.dot_dimension_numbers<[1], [0], [0], [1], [0, 0, 1, 1], [], []>} : vector<2x32xf32>, vector<32x128xf32>, vector<2x128xf32> -> vector<2x128xf32>
    %c0_33 = arith.constant 0 : index
    %c0_34 = arith.constant 0 : index
    %110 = vector.load %arg9[%c0_33, %c0_34] : memref<1x128xf32, #tpu.memory_space<vmem>>, vector<1x128xf32>
    %111 = vector.broadcast %110 : vector<1x128xf32> to vector<2x128xf32>
    %112 = arith.addf %109, %111 : vector<2x128xf32>
    %113 = arith.negf %112 : vector<2x128xf32>
    %114 = math.exp %113 : vector<2x128xf32>
    %cst_35 = arith.constant 1.000000e+00 : f32
    %115 = vector.broadcast %cst_35 : f32 to vector<2x128xf32>
    %116 = arith.addf %115, %114 : vector<2x128xf32>
    %117 = arith.divf %115, %116 : vector<2x128xf32>
    %118 = vector.shape_cast %117 : vector<2x128xf32> to vector<2x1x1x128xf32>
    %119 = vector.broadcast %118 : vector<2x1x1x128xf32> to vector<2x8x8x128xf32>
    %120 = arith.mulf %97, %119 : vector<2x8x8x128xf32>
    %121 = vector.shape_cast %120 : vector<2x8x8x128xf32> to vector<128x128xf32>
    %c0_36 = arith.constant 0 : index
    %c0_37 = arith.constant 0 : index
    %122 = vector.load %arg10[%c0_36, %c0_37] : memref<128x128xf32, #tpu.memory_space<vmem>>, vector<128x128xf32>
    %cst_38 = arith.constant dense<0.000000e+00> : vector<128x128xf32>
    %123 = tpu.matmul %121, %122, %cst_38 {dimension_numbers = #tpu.dot_dimension_numbers<[1], [0], [0], [1], [0, 0, 1, 1], [], []>} : vector<128x128xf32>, vector<128x128xf32>, vector<128x128xf32> -> vector<128x128xf32>
    %c0_39 = arith.constant 0 : index
    %c0_40 = arith.constant 0 : index
    %124 = vector.load %arg11[%c0_39, %c0_40] : memref<1x128xf32, #tpu.memory_space<vmem>>, vector<1x128xf32>
    %125 = vector.broadcast %124 : vector<1x128xf32> to vector<128x128xf32>
    %126 = arith.addf %123, %125 : vector<128x128xf32>
    %127 = arith.addf %1, %126 : vector<128x128xf32>
    %128 = vector.shape_cast %127 : vector<128x128xf32> to vector<2x8x8x128xf32>
    %c0_41 = arith.constant 0 : index
    %c0_42 = arith.constant 0 : index
    %c0_43 = arith.constant 0 : index
    %c0_44 = arith.constant 0 : index
    %129 = vector.load %arg12[%c0_41, %c0_42, %c0_43, %c0_44] : memref<2x8x8x128xf32, #tpu.memory_space<vmem>>, vector<2x8x8x128xf32>
    tpu.vector_store %arg12[%c0_41, %c0_42, %c0_43, %c0_44], %128 {strides = array<i32>} : memref<2x8x8x128xf32, #tpu.memory_space<vmem>>, vector<2x8x8x128xf32>,
    return
  }
  func.func @transform_0(%arg0: i32) -> (i32, i32, i32, i32) {
    %c0_i32 = arith.constant 0 : i32
    %c0_i32_0 = arith.constant 0 : i32
    %c0_i32_1 = arith.constant 0 : i32
    %c0_i32_2 = arith.constant 0 : i32
    return %arg0, %c0_i32, %c0_i32_0, %c0_i32_1 : i32, i32, i32, i32
  }
  func.func @transform_1(%arg0: i32) -> (i32, i32) {
    %c0_i32 = arith.constant 0 : i32
    %c0_i32_0 = arith.constant 0 : i32
    %c0_i32_1 = arith.constant 0 : i32
    return %c0_i32, %c0_i32_0 : i32, i32
  }
  func.func @transform_2(%arg0: i32) -> (i32, i32) {
    %c0_i32 = arith.constant 0 : i32
    %c0_i32_0 = arith.constant 0 : i32
    %c0_i32_1 = arith.constant 0 : i32
    return %c0_i32, %c0_i32_0 : i32, i32
  }
  func.func @transform_3(%arg0: i32) -> (i32, i32, i32) {
    %c0_i32 = arith.constant 0 : i32
    %c0_i32_0 = arith.constant 0 : i32
    %c0_i32_1 = arith.constant 0 : i32
    %c0_i32_2 = arith.constant 0 : i32
    return %c0_i32, %c0_i32_0, %c0_i32_1 : i32, i32, i32
  }
  func.func @transform_4(%arg0: i32) -> (i32, i32) {
    %c0_i32 = arith.constant 0 : i32
    %c0_i32_0 = arith.constant 0 : i32
    %c0_i32_1 = arith.constant 0 : i32
    return %c0_i32, %c0_i32_0 : i32, i32
  }
  func.func @transform_5(%arg0: i32) -> (i32, i32) {
    %c0_i32 = arith.constant 0 : i32
    %c0_i32_0 = arith.constant 0 : i32
    %c0_i32_1 = arith.constant 0 : i32
    return %c0_i32, %c0_i32_0 : i32, i32
  }
  func.func @transform_6(%arg0: i32) -> (i32, i32) {
    %c0_i32 = arith.constant 0 : i32
    %c0_i32_0 = arith.constant 0 : i32
    %c0_i32_1 = arith.constant 0 : i32
    return %c0_i32, %c0_i32_0 : i32, i32
  }
  func.func @transform_7(%arg0: i32) -> (i32, i32) {
    %c0_i32 = arith.constant 0 : i32
    %c0_i32_0 = arith.constant 0 : i32
    %c0_i32_1 = arith.constant 0 : i32
    return %c0_i32, %c0_i32_0 : i32, i32
  }
  func.func @transform_8(%arg0: i32) -> (i32, i32) {
    %c0_i32 = arith.constant 0 : i32
    %c0_i32_0 = arith.constant 0 : i32
    %c0_i32_1 = arith.constant 0 : i32
    return %c0_i32, %c0_i32_0 : i32, i32
  }
  func.func @transform_9(%arg0: i32) -> (i32, i32) {
    %c0_i32 = arith.constant 0 : i32
    %c0_i32_0 = arith.constant 0 : i32
    %c0_i32_1 = arith.constant 0 : i32
    return %c0_i32, %c0_i32_0 : i32, i32
  }
  func.func @transform_10(%arg0: i32) -> (i32, i32) {
    %c0_i32 = arith.constant 0 : i32
    %c0_i32_0 = arith.constant 0 : i32
    %c0_i32_1 = arith.constant 0 : i32
    return %c0_i32, %c0_i32_0 : i32, i32
  }
  func.func @transform_11(%arg0: i32) -> (i32, i32, i32, i32) {
    %c0_i32 = arith.constant 0 : i32
    %c0_i32_0 = arith.constant 0 : i32
    %c0_i32_1 = arith.constant 0 : i32
    %c0_i32_2 = arith.constant 0 : i32
    return %arg0, %c0_i32, %c0_i32_0, %c0_i32_1 : i32, i32, i32, i32
  }
}

</mosaic_0001>

<llo_original>
// kernel: tpu_custom_call.1
$region0: #{tpu_custom_call.1}
  #allocation0 [shape = 'u32[]', space=smem, size = 0x4, offset = 0x4, fixed_abs, tag = 'smem constant byte address 0x4 - core index']
  #allocation1 [shape = 'u32[144,128]{1,0:T(1,128)}', space=vmem, size = 0x12000, scoped, tag = 'internal scratch']
  %s0 = inlined_call_operand.hbm [shape: f32[4,8,8,128], index: 0, kind: input, shape index: {}]
  %s1 = inlined_call_operand.vmem [shape: f32[128,128], index: 1, kind: input, shape index: {}]
  %s2 = inlined_call_operand.vmem [shape: f32[1,128], index: 2, kind: input, shape index: {}]
  %s3 = inlined_call_operand.hbm [shape: f32[3,3,128], index: 3, kind: input, shape index: {}]
  %s4 = inlined_call_operand.vmem [shape: f32[1,128], index: 4, kind: input, shape index: {}]
  %s5 = inlined_call_operand.vmem [shape: f32[128,32], index: 5, kind: input, shape index: {}]
  %s6 = inlined_call_operand.vmem [shape: f32[1,32], index: 6, kind: input, shape index: {}]
  %s7 = inlined_call_operand.vmem [shape: f32[32,128], index: 7, kind: input, shape index: {}]
  %s8 = inlined_call_operand.vmem [shape: f32[1,128], index: 8, kind: input, shape index: {}]
  %s9 = inlined_call_operand.hbm [shape: f32[128,128], index: 9, kind: input, shape index: {}]
  %s10 = inlined_call_operand.vmem [shape: f32[1,128], index: 10, kind: input, shape index: {}]
  %s11 = inlined_call_operand.hbm [shape: f32[4,8,8,128], index: 11, kind: output, shape index: {}]
  %s12 = sld [smem:[#allocation0]]
  $region89: #{tpu_custom_call.1} parent=0
    _
  %s14 = ssub.s32 1, %s12
  %s15 = scalar_select 0, %s14, %s12
  $region1: #{tpu_custom_call.1} parent=0
    #allocation2 [shape = 'u8[131072]{0}', space=vmem, size = 0x20000, scoped, tag = 'input window, operand 0']
    #allocation3 [shape = 's32[2]{0}', space=sflag, size = 0x8, scoped, tag = 'scoped memory for tpu_custom_call.1']
    #allocation4 [shape = 's32[2]{0}', space=sflag, size = 0x8, scoped, tag = 'scoped memory for tpu_custom_call.1']
    #allocation5 [shape = 'u8[6144]{0}', space=vmem, size = 0x1800, scoped, tag = 'input window, operand 3, single buffered']
    #allocation6 [shape = 's32[1]{0}', space=sflag, size = 0x4, scoped, tag = 'scoped memory for tpu_custom_call.1']
    #allocation7 [shape = 'u8[65536]{0}', space=vmem, size = 0x10000, scoped, tag = 'input window, operand 9, single buffered']
    #allocation8 [shape = 'u8[131072]{0}', space=vmem, size = 0x20000, scoped, tag = 'output window, operand 0']
    %16 = vsyncpa [#allocation3], 0
    %s17 = scalar_lea.sflag [#allocation3], 1
    %18 = vsyncpa %s17, 0
    %19 = vsyncpa [#allocation6], 0
    %20 = vsyncpa [#allocation4], 0
    %s21 = scalar_lea.sflag [#allocation4], 1
    %22 = vsyncpa %s21, 0
    loop: start=0, step=1, limit=4
    $region2: #{tpu_custom_call.1} parent=1 // loop_pre_header
      _
    $region3: #{tpu_custom_call.1} parent=1 // loop_header
      %s24 = sphi 0, %s28
      %p25 = scmp.ge.s32.totalorder %s24, 4
      %s34 = sphi 0, %s36
      %s37 = sphi 0, %s34
      %s38 = sphi 0, %s37
      %s54 = sphi 0, %s38
      %s58 = sphi 0, %s58
      %s60 = sphi 0, %s58
      %s61 = sphi 0, %s60
      %s75 = sphi 0, %s61
      %s79 = sphi 0, %s79
      %s81 = sphi 0, %s79
      %s82 = sphi 0, %s81
      %s96 = sphi 0, %s82
      %s100 = sphi 0, %s100
      %s102 = sphi 0, %s100
      %s103 = sphi 0, %s102
      %s117 = sphi 0, %s103
      %s121 = sphi 0, %s121
      %s123 = sphi 0, %s121
      %s124 = sphi 0, %s123
      %s138 = sphi 0, %s124
      %s142 = sphi 0, %s142
      %s144 = sphi 0, %s142
      %s145 = sphi 0, %s144
      %s159 = sphi 0, %s145
      %s163 = sphi 0, %s163
      %s165 = sphi 0, %s163
      %s166 = sphi 0, %s165
      %s180 = sphi 0, %s166
      %s184 = sphi 0, %s184
      %s186 = sphi 0, %s184
      %s187 = sphi 0, %s186
      %s201 = sphi 0, %s187
      %s205 = sphi 0, %s205
      %s207 = sphi 0, %s205
      %s208 = sphi 0, %s207
      %s222 = sphi 0, %s208
      %s226 = sphi 0, %s226
      %s228 = sphi 0, %s226
      %s229 = sphi 0, %s228
      %s243 = sphi 0, %s229
      %s247 = sphi 0, %s247
      %s249 = sphi 0, %s247
      %s250 = sphi 0, %s249
      %s264 = sphi 0, %s250
      %s270 = sphi 0, %s272
      %s273 = sphi 0, %s270
      %s274 = sphi 0, %s273
      %s290 = sphi 0, %s274
    $region4: #{tpu_custom_call.1} parent=1 // loop_header_branch
      %27 = sbr.rel (%p25) target = $region8
    $region5: #{tpu_custom_call.1} parent=1 // loop_body
      %s29 = ssub.s32 %s24, 1
      %s30 = ssub.s32 %s24, 2
      %s31 = sadd.s32 %s24, 1
      %s32 = ssub.s32 %s24, %s31
      %p33 = scmp.eq.s32.totalorder %s32, 0
      %s35 = sadd.s32 %s34, 1
      %s36 = scalar_select %p33, %s34, %s35
      %p39 = pneg %p33
      %p40 = scmp.eq.s32.totalorder %s24, 1
      %p41 = por %p39, %p40
      %p42 = scmp.ne.s32.totalorder %s34, %s37
      %p43 = scmp.eq.s32.totalorder %s24, 0
      %p44 = por %p42, %p43
      %p45 = scmp.ne.s32.totalorder %s34, %s37
      %p46 = scmp.eq.s32.totalorder %s29, 1
      %p47 = por %p45, %p46
      %p48 = scmp.ne.s32.totalorder %s37, %s38
      %p49 = scmp.eq.s32.totalorder %s29, 0
      %p50 = por %p48, %p49
      %p51 = scmp.ne.s32.totalorder %s37, %s38
      %p52 = scmp.eq.s32.totalorder %s30, 1
      %p53 = por %p51, %p52
      %p55 = scmp.ne.s32.totalorder %s38, %s54
      %p56 = scmp.eq.s32.totalorder %s30, 0
      %p57 = por %p55, %p56
      %s59 = sadd.s32 %s58, 1
      %p62 = scmp.eq.s32.totalorder %s24, 1
      %p63 = scmp.ne.s32.totalorder %s58, %s60
      %p64 = scmp.eq.s32.totalorder %s24, 0
      %p65 = por %p63, %p64
      %p66 = scmp.ne.s32.totalorder %s58, %s60
      %p67 = scmp.eq.s32.totalorder %s29, 1
      %p68 = por %p66, %p67
      %p69 = scmp.ne.s32.totalorder %s60, %s61
      %p70 = scmp.eq.s32.totalorder %s29, 0
      %p71 = por %p69, %p70
      %p72 = scmp.ne.s32.totalorder %s60, %s61
      %p73 = scmp.eq.s32.totalorder %s30, 1
      %p74 = por %p72, %p73
      %p76 = scmp.ne.s32.totalorder %s61, %s75
      %p77 = scmp.eq.s32.totalorder %s30, 0
      %p78 = por %p76, %p77
      %s80 = sadd.s32 %s79, 1
      %p83 = scmp.eq.s32.totalorder %s24, 1
      %p84 = scmp.ne.s32.totalorder %s79, %s81
      %p85 = scmp.eq.s32.totalorder %s24, 0
      %p86 = por %p84, %p85
      %p87 = scmp.ne.s32.totalorder %s79, %s81
      %p88 = scmp.eq.s32.totalorder %s29, 1
      %p89 = por %p87, %p88
      %p90 = scmp.ne.s32.totalorder %s81, %s82
      %p91 = scmp.eq.s32.totalorder %s29, 0
      %p92 = por %p90, %p91
      %p93 = scmp.ne.s32.totalorder %s81, %s82
      %p94 = scmp.eq.s32.totalorder %s30, 1
      %p95 = por %p93, %p94
      %p97 = scmp.ne.s32.totalorder %s82, %s96
      %p98 = scmp.eq.s32.totalorder %s30, 0
      %p99 = por %p97, %p98
      %s101 = sadd.s32 %s100, 1
      %p104 = scmp.eq.s32.totalorder %s24, 1
      %p105 = scmp.ne.s32.totalorder %s100, %s102
      %p106 = scmp.eq.s32.totalorder %s24, 0
      %p107 = por %p105, %p106
      %p108 = scmp.ne.s32.totalorder %s100, %s102
      %p109 = scmp.eq.s32.totalorder %s29, 1
      %p110 = por %p108, %p109
      %p111 = scmp.ne.s32.totalorder %s102, %s103
      %p112 = scmp.eq.s32.totalorder %s29, 0
      %p113 = por %p111, %p112
      %p114 = scmp.ne.s32.totalorder %s102, %s103
      %p115 = scmp.eq.s32.totalorder %s30, 1
      %p116 = por %p114, %p115
      %p118 = scmp.ne.s32.totalorder %s103, %s117
      %p119 = scmp.eq.s32.totalorder %s30, 0
      %p120 = por %p118, %p119
      %s122 = sadd.s32 %s121, 1
      %p125 = scmp.eq.s32.totalorder %s24, 1
      %p126 = scmp.ne.s32.totalorder %s121, %s123
      %p127 = scmp.eq.s32.totalorder %s24, 0
      %p128 = por %p126, %p127
      %p129 = scmp.ne.s32.totalorder %s121, %s123
      %p130 = scmp.eq.s32.totalorder %s29, 1
      %p131 = por %p129, %p130
      %p132 = scmp.ne.s32.totalorder %s123, %s124
      %p133 = scmp.eq.s32.totalorder %s29, 0
      %p134 = por %p132, %p133
      %p135 = scmp.ne.s32.totalorder %s123, %s124
      %p136 = scmp.eq.s32.totalorder %s30, 1
      %p137 = por %p135, %p136
      %p139 = scmp.ne.s32.totalorder %s124, %s138
      %p140 = scmp.eq.s32.totalorder %s30, 0
      %p141 = por %p139, %p140
      %s143 = sadd.s32 %s142, 1
      %p146 = scmp.eq.s32.totalorder %s24, 1
      %p147 = scmp.ne.s32.totalorder %s142, %s144
      %p148 = scmp.eq.s32.totalorder %s24, 0
      %p149 = por %p147, %p148
      %p150 = scmp.ne.s32.totalorder %s142, %s144
      %p151 = scmp.eq.s32.totalorder %s29, 1
      %p152 = por %p150, %p151
      %p153 = scmp.ne.s32.totalorder %s144, %s145
      %p154 = scmp.eq.s32.totalorder %s29, 0
      %p155 = por %p153, %p154
      %p156 = scmp.ne.s32.totalorder %s144, %s145
      %p157 = scmp.eq.s32.totalorder %s30, 1
      %p158 = por %p156, %p157
      %p160 = scmp.ne.s32.totalorder %s145, %s159
      %p161 = scmp.eq.s32.totalorder %s30, 0
      %p162 = por %p160, %p161
      %s164 = sadd.s32 %s163, 1
      %p167 = scmp.eq.s32.totalorder %s24, 1
      %p168 = scmp.ne.s32.totalorder %s163, %s165
      %p169 = scmp.eq.s32.totalorder %s24, 0
      %p170 = por %p168, %p169
      %p171 = scmp.ne.s32.totalorder %s163, %s165
      %p172 = scmp.eq.s32.totalorder %s29, 1
      %p173 = por %p171, %p172
      %p174 = scmp.ne.s32.totalorder %s165, %s166
      %p175 = scmp.eq.s32.totalorder %s29, 0
      %p176 = por %p174, %p175
      %p177 = scmp.ne.s32.totalorder %s165, %s166
      %p178 = scmp.eq.s32.totalorder %s30, 1
      %p179 = por %p177, %p178
      %p181 = scmp.ne.s32.totalorder %s166, %s180
      %p182 = scmp.eq.s32.totalorder %s30, 0
      %p183 = por %p181, %p182
      %s185 = sadd.s32 %s184, 1
      %p188 = scmp.eq.s32.totalorder %s24, 1
      %p189 = scmp.ne.s32.totalorder %s184, %s186
      %p190 = scmp.eq.s32.totalorder %s24, 0
      %p191 = por %p189, %p190
      %p192 = scmp.ne.s32.totalorder %s184, %s186
      %p193 = scmp.eq.s32.totalorder %s29, 1
      %p194 = por %p192, %p193
      %p195 = scmp.ne.s32.totalorder %s186, %s187
      %p196 = scmp.eq.s32.totalorder %s29, 0
      %p197 = por %p195, %p196
      %p198 = scmp.ne.s32.totalorder %s186, %s187
      %p199 = scmp.eq.s32.totalorder %s30, 1
      %p200 = por %p198, %p199
      %p202 = scmp.ne.s32.totalorder %s187, %s201
      %p203 = scmp.eq.s32.totalorder %s30, 0
      %p204 = por %p202, %p203
      %s206 = sadd.s32 %s205, 1
      %p209 = scmp.eq.s32.totalorder %s24, 1
      %p210 = scmp.ne.s32.totalorder %s205, %s207
      %p211 = scmp.eq.s32.totalorder %s24, 0
      %p212 = por %p210, %p211
      %p213 = scmp.ne.s32.totalorder %s205, %s207
      %p214 = scmp.eq.s32.totalorder %s29, 1
      %p215 = por %p213, %p214
      %p216 = scmp.ne.s32.totalorder %s207, %s208
      %p217 = scmp.eq.s32.totalorder %s29, 0
      %p218 = por %p216, %p217
      %p219 = scmp.ne.s32.totalorder %s207, %s208
      %p220 = scmp.eq.s32.totalorder %s30, 1
      %p221 = por %p219, %p220
      %p223 = scmp.ne.s32.totalorder %s208, %s222
      %p224 = scmp.eq.s32.totalorder %s30, 0
      %p225 = por %p223, %p224
      %s227 = sadd.s32 %s226, 1
      %p230 = scmp.eq.s32.totalorder %s24, 1
      %p231 = scmp.ne.s32.totalorder %s226, %s228
      %p232 = scmp.eq.s32.totalorder %s24, 0
      %p233 = por %p231, %p232
      %p234 = scmp.ne.s32.totalorder %s226, %s228
      %p235 = scmp.eq.s32.totalorder %s29, 1
      %p236 = por %p234, %p235
      %p237 = scmp.ne.s32.totalorder %s228, %s229
      %p238 = scmp.eq.s32.totalorder %s29, 0
      %p239 = por %p237, %p238
      %p240 = scmp.ne.s32.totalorder %s228, %s229
      %p241 = scmp.eq.s32.totalorder %s30, 1
      %p242 = por %p240, %p241
      %p244 = scmp.ne.s32.totalorder %s229, %s243
      %p245 = scmp.eq.s32.totalorder %s30, 0
      %p246 = por %p244, %p245
      %s248 = sadd.s32 %s247, 1
      %p251 = scmp.eq.s32.totalorder %s24, 1
      %p252 = scmp.ne.s32.totalorder %s247, %s249
      %p253 = scmp.eq.s32.totalorder %s24, 0
      %p254 = por %p252, %p253
      %p255 = scmp.ne.s32.totalorder %s247, %s249
      %p256 = scmp.eq.s32.totalorder %s29, 1
      %p257 = por %p255, %p256
      %p258 = scmp.ne.s32.totalorder %s249, %s250
      %p259 = scmp.eq.s32.totalorder %s29, 0
      %p260 = por %p258, %p259
      %p261 = scmp.ne.s32.totalorder %s249, %s250
      %p262 = scmp.eq.s32.totalorder %s30, 1
      %p263 = por %p261, %p262
      %p265 = scmp.ne.s32.totalorder %s250, %s264
      %p266 = scmp.eq.s32.totalorder %s30, 0
      %p267 = por %p265, %p266
      %s268 = ssub.s32 %s24, %s31
      %p269 = scmp.eq.s32.totalorder %s268, 0
      %s271 = sadd.s32 %s270, 1
      %s272 = scalar_select %p269, %s270, %s271
      %p275 = pneg %p269
      %p276 = scmp.eq.s32.totalorder %s24, 1
      %p277 = por %p275, %p276
      %p278 = scmp.ne.s32.totalorder %s270, %s273
      %p279 = scmp.eq.s32.totalorder %s24, 0
      %p280 = por %p278, %p279
      %p281 = scmp.ne.s32.totalorder %s270, %s273
      %p282 = scmp.eq.s32.totalorder %s29, 1
      %p283 = por %p281, %p282
      %p284 = scmp.ne.s32.totalorder %s273, %s274
      %p285 = scmp.eq.s32.totalorder %s29, 0
      %p286 = por %p284, %p285
      %p287 = scmp.ne.s32.totalorder %s273, %s274
      %p288 = scmp.eq.s32.totalorder %s30, 1
      %p289 = por %p287, %p288
      %p291 = scmp.ne.s32.totalorder %s274, %s290
      %p292 = scmp.eq.s32.totalorder %s30, 0
      %p293 = por %p291, %p292
      %p294 = scmp.le.s32.totalorder 1, %s24
      %p295 = scmp.lt.s32.totalorder %s24, 3
      %p296 = pnand %p294, %p295
      %p297 = pneg %p296
      // Predicated region
      $region9: #{tpu_custom_call.1} parent=5 // pred_check
        _
      $region10: #{tpu_custom_call.1} parent=5 // pred_check_branch
        %299 = sbr.rel (%p296) target = $region12
      $region11: #{tpu_custom_call.1} parent=5 // pred_region
        %s300 = ssub.s32 %s24, 1
        // Predicated region
        $region13: #{tpu_custom_call.1} parent=11 // pred_check
          %p301 = pneg %p71
        $region14: #{tpu_custom_call.1} parent=11 // pred_check_branch
          %303 = sbr.rel (%p301) target = $region16
        $region15: #{tpu_custom_call.1} parent=11 // pred_region
          _
        $region16: #{tpu_custom_call.1} parent=11 // pred_fallthru
          _
        // Predicated region
        $region17: #{tpu_custom_call.1} parent=11 // pred_check
          %p304 = pneg %p92
        $region18: #{tpu_custom_call.1} parent=11 // pred_check_branch
          %306 = sbr.rel (%p304) target = $region20
        $region19: #{tpu_custom_call.1} parent=11 // pred_region
          _
        $region20: #{tpu_custom_call.1} parent=11 // pred_fallthru
          _
        // Predicated region
        $region21: #{tpu_custom_call.1} parent=11 // pred_check
          %p307 = pneg %p113
        $region22: #{tpu_custom_call.1} parent=11 // pred_check_branch
          %309 = sbr.rel (%p307) target = $region24
        $region23: #{tpu_custom_call.1} parent=11 // pred_region
          %s311 = ssub.s32 192, 192
          %312 = vsyncadd [#allocation6], %s311
          %s313 = sshll.u32 [#allocation5], 4
          %s314 = int_to_ptr.vmem [resolvable:$true] %s313
          %319 = dma.hbm_to_vmem [thread:$0]  %s3, 192, %s314, [#allocation6], 64, 64, 4
        $region24: #{tpu_custom_call.1} parent=11 // pred_fallthru
          _
        // Predicated region
        $region25: #{tpu_custom_call.1} parent=11 // pred_check
          %p320 = pneg %p134
        $region26: #{tpu_custom_call.1} parent=11 // pred_check_branch
          %322 = sbr.rel (%p320) target = $region28
        $region27: #{tpu_custom_call.1} parent=11 // pred_region
          _
        $region28: #{tpu_custom_call.1} parent=11 // pred_fallthru
          _
        // Predicated region
        $region29: #{tpu_custom_call.1} parent=11 // pred_check
          %p323 = pneg %p155
        $region30: #{tpu_custom_call.1} parent=11 // pred_check_branch
          %325 = sbr.rel (%p323) target = $region32
        $region31: #{tpu_custom_call.1} parent=11 // pred_region
          _
        $region32: #{tpu_custom_call.1} parent=11 // pred_fallthru
          _
        // Predicated region
        $region33: #{tpu_custom_call.1} parent=11 // pred_check
          %p326 = pneg %p176
        $region34: #{tpu_custom_call.1} parent=11 // pred_check_branch
          %328 = sbr.rel (%p326) target = $region36
        $region35: #{tpu_custom_call.1} parent=11 // pred_region
          _
        $region36: #{tpu_custom_call.1} parent=11 // pred_fallthru
          _
        // Predicated region
        $region37: #{tpu_custom_call.1} parent=11 // pred_check
          %p329 = pneg %p197
        $region38: #{tpu_custom_call.1} parent=11 // pred_check_branch
          %331 = sbr.rel (%p329) target = $region40
        $region39: #{tpu_custom_call.1} parent=11 // pred_region
          _
        $region40: #{tpu_custom_call.1} parent=11 // pred_fallthru
          _
        // Predicated region
        $region41: #{tpu_custom_call.1} parent=11 // pred_check
          %p332 = pneg %p218
        $region42: #{tpu_custom_call.1} parent=11 // pred_check_branch
          %334 = sbr.rel (%p332) target = $region44
        $region43: #{tpu_custom_call.1} parent=11 // pred_region
          _
        $region44: #{tpu_custom_call.1} parent=11 // pred_fallthru
          _
        // Predicated region
        $region45: #{tpu_custom_call.1} parent=11 // pred_check
          %p335 = pneg %p239
        $region46: #{tpu_custom_call.1} parent=11 // pred_check_branch
          %337 = sbr.rel (%p335) target = $region48
        $region47: #{tpu_custom_call.1} parent=11 // pred_region
          %s339 = ssub.s32 2048, 2048
          %340 = vsyncadd [#allocation6], %s339
          %s341 = sshll.u32 [#allocation7], 4
          %s342 = int_to_ptr.vmem [resolvable:$true] %s341
          %347 = dma.hbm_to_vmem [thread:$0]  %s9, 2048, %s342, [#allocation6], 128, 128, 8
        $region48: #{tpu_custom_call.1} parent=11 // pred_fallthru
          _
        // Predicated region
        $region49: #{tpu_custom_call.1} parent=11 // pred_check
          %p348 = pneg %p260
        $region50: #{tpu_custom_call.1} parent=11 // pred_check_branch
          %350 = sbr.rel (%p348) target = $region52
        $region51: #{tpu_custom_call.1} parent=11 // pred_region
          _
        $region52: #{tpu_custom_call.1} parent=11 // pred_fallthru
          _
      $region12: #{tpu_custom_call.1} parent=5 // pred_fallthru
        _
      %p351 = scmp.lt.s32.totalorder %s24, 2
      // Predicated region
      $region53: #{tpu_custom_call.1} parent=5 // pred_check
        %p352 = pneg %p351
      $region54: #{tpu_custom_call.1} parent=5 // pred_check_branch
        %354 = sbr.rel (%p352) target = $region56
      $region55: #{tpu_custom_call.1} parent=5 // pred_region
        // Predicated region
        $region57: #{tpu_custom_call.1} parent=55 // pred_check
          %p355 = pneg %p44
        $region58: #{tpu_custom_call.1} parent=55 // pred_check_branch
          %357 = sbr.rel (%p355) target = $region60
        $region59: #{tpu_custom_call.1} parent=55 // pred_region
          %s358 = sand.u32 %s34, 1
          %s359 = scalar_lea.sflag [#allocation3], %s358
          %s360 = sand.u32 %s34, 1
          %s361 = smul.addr %s360, 128
          %s362 = scalar_lea.vmem [#allocation2], %s361
          %s363 = smul.u32 2, %s24
          %s365 = ssub.s32 2048, 2048
          %366 = vsyncadd %s359, %s365
          %s367 = smul.addr %s363, 8
          %s368 = smul.addr %s367, 128
          %s369 = scalar_lea.hbm %s0, %s368
          %s370 = sshll.u32 %s362, 4
          %s371 = int_to_ptr.vmem [resolvable:$true] %s370
          %376 = dma.hbm_to_vmem [thread:$0]  %s369, 2048, %s371, %s359, 128, 128, 8
        $region60: #{tpu_custom_call.1} parent=55 // pred_fallthru
          _
      $region56: #{tpu_custom_call.1} parent=5 // pred_fallthru
        _
      %p377 = scmp.le.s32.totalorder 1, %s24
      %p378 = scmp.lt.s32.totalorder %s24, 3
      %p379 = pnand %p377, %p378
      %p380 = pneg %p379
      // Predicated region
      $region61: #{tpu_custom_call.1} parent=5 // pred_check
        _
      $region62: #{tpu_custom_call.1} parent=5 // pred_check_branch
        %382 = sbr.rel (%p379) target = $region64
      $region63: #{tpu_custom_call.1} parent=5 // pred_region
        %s383 = ssub.s32 %s24, 1
        %s384 = sand.u32 %s37, 1
        %s385 = scalar_lea.sflag [#allocation3], %s384
        %s386 = sand.u32 %s37, 1
        %s387 = smul.addr %s386, 128
        %s388 = scalar_lea.vmem [#allocation2], %s387
        // Predicated region
        $region65: #{tpu_custom_call.1} parent=63 // pred_check
          %p389 = pneg %p50
        $region66: #{tpu_custom_call.1} parent=63 // pred_check_branch
          %391 = sbr.rel (%p389) target = $region68
        $region67: #{tpu_custom_call.1} parent=63 // pred_region
          %392 = dma.done %s385, 2048
        $region68: #{tpu_custom_call.1} parent=63 // pred_fallthru
          _
        // Predicated region
        $region69: #{tpu_custom_call.1} parent=63 // pred_check
          %p393 = pneg %p113
        $region70: #{tpu_custom_call.1} parent=63 // pred_check_branch
          %395 = sbr.rel (%p393) target = $region72
        $region71: #{tpu_custom_call.1} parent=63 // pred_region
          %396 = dma.done [#allocation6], 192
        $region72: #{tpu_custom_call.1} parent=63 // pred_fallthru
          _
        // Predicated region
        $region73: #{tpu_custom_call.1} parent=63 // pred_check
          %p397 = pneg %p239
        $region74: #{tpu_custom_call.1} parent=63 // pred_check_branch
          %399 = sbr.rel (%p397) target = $region76
        $region75: #{tpu_custom_call.1} parent=63 // pred_region
          %400 = dma.done [#allocation6], 2048
        $region76: #{tpu_custom_call.1} parent=63 // pred_fallthru
          _
        %s401 = sand.u32 %s37, 1
        %s402 = scalar_lea.sflag [#allocation3], %s401
        %s403 = sand.u32 %s37, 1
        %s404 = smul.addr %s403, 128
        %s405 = scalar_lea.vmem [#allocation2], %s404
        %p406 = pneg %p50
        %p407 = pneg %p47
        %p408 = pneg %p71
        %p409 = pneg %p68
        %p410 = pneg %p92
        %p411 = pneg %p89
        %p412 = pneg %p113
        %p413 = pneg %p110
        %p414 = pneg %p134
        %p415 = pneg %p131
        %p416 = pneg %p155
        %p417 = pneg %p152
        %p418 = pneg %p176
        %p419 = pneg %p173
        %p420 = pneg %p197
        %p421 = pneg %p194
        %p422 = pneg %p218
        %p423 = pneg %p215
        %p424 = pneg %p239
        %p425 = pneg %p236
        %p426 = pneg %p260
        %p427 = pneg %p257
        %p428 = pneg %p286
        %p429 = pneg %p283
        %s430 = sand.u32 %s273, 1
        %s431 = scalar_lea.sflag [#allocation4], %s430
        %s432 = sand.u32 %s273, 1
        %s433 = smul.addr %s432, 128
        %s434 = scalar_lea.vmem [#allocation8], %s433
        %s435 = smul.u32 2, %s29
        %s436 = smul.u32 2, %s29
        %v437 = vld [vmem:[%s388] sm:$0xff]
        %v438 = vld [vmem:[%s388 + $0x8] sm:$0xff]
        %v439 = vld [vmem:[%s388 + $0x10] sm:$0xff]
        %v440 = vld [vmem:[%s388 + $0x18] sm:$0xff]
        %v441 = vld [vmem:[%s388 + $0x20] sm:$0xff]
        %v442 = vld [vmem:[%s388 + $0x28] sm:$0xff]
        %v443 = vld [vmem:[%s388 + $0x30] sm:$0xff]
        %v444 = vld [vmem:[%s388 + $0x38] sm:$0xff]
        %v445 = vld [vmem:[%s388 + $0x40] sm:$0xff]
        %v446 = vld [vmem:[%s388 + $0x48] sm:$0xff]
        %v447 = vld [vmem:[%s388 + $0x50] sm:$0xff]
        %v448 = vld [vmem:[%s388 + $0x58] sm:$0xff]
        %v449 = vld [vmem:[%s388 + $0x60] sm:$0xff]
        %v450 = vld [vmem:[%s388 + $0x68] sm:$0xff]
        %v451 = vld [vmem:[%s388 + $0x70] sm:$0xff]
        %v452 = vld [vmem:[%s388 + $0x78] sm:$0xff]
        %v453 = vld [vmem:[%s1] sm:$0xff]
        %v454 = vld [vmem:[%s1 + $0x8] sm:$0xff]
        %v455 = vld [vmem:[%s1 + $0x10] sm:$0xff]
        %v456 = vld [vmem:[%s1 + $0x18] sm:$0xff]
        %v457 = vld [vmem:[%s1 + $0x20] sm:$0xff]
        %v458 = vld [vmem:[%s1 + $0x28] sm:$0xff]
        %v459 = vld [vmem:[%s1 + $0x30] sm:$0xff]
        %v460 = vld [vmem:[%s1 + $0x38] sm:$0xff]
        %v461 = vld [vmem:[%s1 + $0x40] sm:$0xff]
        %v462 = vld [vmem:[%s1 + $0x48] sm:$0xff]
        %v463 = vld [vmem:[%s1 + $0x50] sm:$0xff]
        %v464 = vld [vmem:[%s1 + $0x58] sm:$0xff]
        %v465 = vld [vmem:[%s1 + $0x60] sm:$0xff]
        %v466 = vld [vmem:[%s1 + $0x68] sm:$0xff]
        %v467 = vld [vmem:[%s1 + $0x70] sm:$0xff]
        %v468 = vld [vmem:[%s1 + $0x78] sm:$0xff]
        %v469 = vld [vmem:[%s2] sm:$0x1]
        %v471 = vlaneseq
        %v472 = vshrl.u32 %v471, 7
        %v473 = vsub.s32 0, %v472
        %v474 = vrot.slane %v469, %v473
        %476 = vmatprep.subr.mxu0 0.0
        %477 = vmatpush1.msra.mxu0 %v453
        %478 = vmatprep.subr.mxu0 0.0
        %479 = vmatpush1.msra.mxu0 %v454
        %480 = vmatprep.subr.mxu0 0.0
        %481 = vmatpush1.msra.mxu0 %v455
        %482 = vmatprep.subr.mxu0 0.0
        %483 = vmatpush1.msra.mxu0 %v456
        %484 = vmatprep.subr.mxu0 0.0
        %485 = vmatpush1.msra.mxu0 %v457
        %486 = vmatprep.subr.mxu0 0.0
        %487 = vmatpush1.msra.mxu0 %v458
        %488 = vmatprep.subr.mxu0 0.0
        %489 = vmatpush1.msra.mxu0 %v459
        %490 = vmatprep.subr.mxu0 0.0
        %491 = vmatpush1.msra.mxu0 %v460
        %492 = vmatprep.subr.mxu0 0.0
        %493 = vmatpush1.msra.mxu0 %v461
        %494 = vmatprep.subr.mxu0 0.0
        %495 = vmatpush1.msra.mxu0 %v462
        %496 = vmatprep.subr.mxu0 0.0
        %497 = vmatpush1.msra.mxu0 %v463
        %498 = vmatprep.subr.mxu0 0.0
        %499 = vmatpush1.msra.mxu0 %v464
        %500 = vmatprep.subr.mxu0 0.0
        %501 = vmatpush1.msra.mxu0 %v465
        %502 = vmatprep.subr.mxu0 0.0
        %503 = vmatpush1.msra.mxu0 %v466
        %504 = vmatprep.subr.mxu0 0.0
        %505 = vmatpush1.msra.mxu0 %v467
        %506 = vmatprep.subr.mxu0 0.0
        %507 = vmatpush1.msra.mxu0 %v468
        %508 = vmatprep.subr.mxu0 0.0
        %509 = vmatpush1.msra.mxu0 0.0
        %510 = vmatprep.subr.mxu0 0.0
        %511 = vmatpush1.msra.mxu0 0.0
        %512 = vmatprep.subr.mxu0 0.0
        %513 = vmatpush1.msra.mxu0 0.0
        %514 = vmatprep.subr.mxu0 0.0
        %515 = vmatpush1.msra.mxu0 0.0
        %516 = vmatprep.subr.mxu0 0.0
        %517 = vmatpush1.msra.mxu0 0.0
        %518 = vmatprep.subr.mxu0 0.0
        %519 = vmatpush1.msra.mxu0 0.0
        %520 = vmatprep.subr.mxu0 0.0
        %521 = vmatpush1.msra.mxu0 0.0
        %522 = vmatprep.subr.mxu0 0.0
        %523 = vmatpush1.msra.mxu0 0.0
        %524 = vmatprep.subr.mxu0 0.0
        %525 = vmatpush1.msra.mxu0 0.0
        %526 = vmatprep.subr.mxu0 0.0
        %527 = vmatpush1.msra.mxu0 0.0
        %528 = vmatprep.subr.mxu0 0.0
        %529 = vmatpush1.msra.mxu0 0.0
        %530 = vmatprep.subr.mxu0 0.0
        %531 = vmatpush1.msra.mxu0 0.0
        %532 = vmatprep.subr.mxu0 0.0
        %533 = vmatpush1.msra.mxu0 0.0
        %534 = vmatprep.subr.mxu0 0.0
        %535 = vmatpush1.msra.mxu0 0.0
        %536 = vmatprep.subr.mxu0 0.0
        %537 = vmatpush1.msra.mxu0 0.0
        %538 = vmatprep.subr.mxu0 0.0
        %539 = vmatpush1.msra.mxu0 0.0
        %540 = vmatprep.mubr.f32.mxu0 0.0
        %541 = vmatmul.mubr.f32.gmra.mrb[0].mxu0 %v437
        %v542 = vpop.f32.mrb[0].mxu0
        %v543 = vadd.f32 %v474, %v542
        %v544 = vpop.f32.mrb[0].mxu0
        %545 = vmatprep.mubr.f32.mxu0 0.0
        %546 = vmatmul.mubr.f32.gmra.mrb[0].mxu0 %v438
        %v547 = vpop.f32.mrb[0].mxu0
        %v548 = vadd.f32 %v474, %v547
        %v549 = vpop.f32.mrb[0].mxu0
        %550 = vmatprep.mubr.f32.mxu0 0.0
        %551 = vmatmul.mubr.f32.gmra.mrb[0].mxu0 %v439
        %v552 = vpop.f32.mrb[0].mxu0
        %v553 = vadd.f32 %v474, %v552
        %v554 = vpop.f32.mrb[0].mxu0
        %555 = vmatprep.mubr.f32.mxu0 0.0
        %556 = vmatmul.mubr.f32.gmra.mrb[0].mxu0 %v440
        %v557 = vpop.f32.mrb[0].mxu0
        %v558 = vadd.f32 %v474, %v557
        %v559 = vpop.f32.mrb[0].mxu0
        %560 = vmatprep.mubr.f32.mxu0 0.0
        %561 = vmatmul.mubr.f32.gmra.mrb[0].mxu0 %v441
        %v562 = vpop.f32.mrb[0].mxu0
        %v563 = vadd.f32 %v474, %v562
        %v564 = vpop.f32.mrb[0].mxu0
        %565 = vmatprep.mubr.f32.mxu0 0.0
        %566 = vmatmul.mubr.f32.gmra.mrb[0].mxu0 %v442
        %v567 = vpop.f32.mrb[0].mxu0
        %v568 = vadd.f32 %v474, %v567
        %v569 = vpop.f32.mrb[0].mxu0
        %570 = vmatprep.mubr.f32.mxu0 0.0
        %571 = vmatmul.mubr.f32.gmra.mrb[0].mxu0 %v443
        %v572 = vpop.f32.mrb[0].mxu0
        %v573 = vadd.f32 %v474, %v572
        %v574 = vpop.f32.mrb[0].mxu0
        %575 = vmatprep.mubr.f32.mxu0 0.0
        %576 = vmatmul.mubr.f32.gmra.mrb[0].mxu0 %v444
        %v577 = vpop.f32.mrb[0].mxu0
        %v578 = vadd.f32 %v474, %v577
        %v579 = vpop.f32.mrb[0].mxu0
        %580 = vmatprep.mubr.f32.mxu0 0.0
        %581 = vmatmul.mubr.f32.gmra.mrb[0].mxu0 %v445
        %v582 = vpop.f32.mrb[0].mxu0
        %v583 = vadd.f32 %v474, %v582
        %v584 = vpop.f32.mrb[0].mxu0
        %585 = vmatprep.mubr.f32.mxu0 0.0
        %586 = vmatmul.mubr.f32.gmra.mrb[0].mxu0 %v446
        %v587 = vpop.f32.mrb[0].mxu0
        %v588 = vadd.f32 %v474, %v587
        %v589 = vpop.f32.mrb[0].mxu0
        %590 = vmatprep.mubr.f32.mxu0 0.0
        %591 = vmatmul.mubr.f32.gmra.mrb[0].mxu0 %v447
        %v592 = vpop.f32.mrb[0].mxu0
        %v593 = vadd.f32 %v474, %v592
        %v594 = vpop.f32.mrb[0].mxu0
        %595 = vmatprep.mubr.f32.mxu0 0.0
        %596 = vmatmul.mubr.f32.gmra.mrb[0].mxu0 %v448
        %v597 = vpop.f32.mrb[0].mxu0
        %v598 = vadd.f32 %v474, %v597
        %v599 = vpop.f32.mrb[0].mxu0
        %600 = vmatprep.mubr.f32.mxu0 0.0
        %601 = vmatmul.mubr.f32.gmra.mrb[0].mxu0 %v449
        %v602 = vpop.f32.mrb[0].mxu0
        %v603 = vadd.f32 %v474, %v602
        %v604 = vpop.f32.mrb[0].mxu0
        %605 = vmatprep.mubr.f32.mxu0 0.0
        %606 = vmatmul.mubr.f32.gmra.mrb[0].mxu0 %v450
        %v607 = vpop.f32.mrb[0].mxu0
        %v608 = vadd.f32 %v474, %v607
        %v609 = vpop.f32.mrb[0].mxu0
        %610 = vmatprep.mubr.f32.mxu0 0.0
        %611 = vmatmul.mubr.f32.gmra.mrb[0].mxu0 %v451
        %v612 = vpop.f32.mrb[0].mxu0
        %v613 = vadd.f32 %v474, %v612
        %v614 = vpop.f32.mrb[0].mxu0
        %615 = vmatprep.mubr.f32.mxu0 0.0
        %616 = vmatmul.mubr.f32.gmra.mrb[0].mxu0 %v452
        %v617 = vpop.f32.mrb[0].mxu0
        %v618 = vadd.f32 %v474, %v617
        %v619 = vpop.f32.mrb[0].mxu0
        %620 = vdwg.mxu0
        %v621 = vmul.f32 %v543, 0.5
        %v622 = vmul.f32 %v548, 0.5
        %v623 = vmul.f32 %v553, 0.5
        %v624 = vmul.f32 %v558, 0.5
        %v625 = vmul.f32 %v563, 0.5
        %v626 = vmul.f32 %v568, 0.5
        %v627 = vmul.f32 %v573, 0.5
        %v628 = vmul.f32 %v578, 0.5
        %v629 = vmul.f32 %v583, 0.5
        %v630 = vmul.f32 %v588, 0.5
        %v631 = vmul.f32 %v593, 0.5
        %v632 = vmul.f32 %v598, 0.5
        %v633 = vmul.f32 %v603, 0.5
        %v634 = vmul.f32 %v608, 0.5
        %v635 = vmul.f32 %v613, 0.5
        %v636 = vmul.f32 %v618, 0.5
        %v637 = vmul.f32 %v543, 0.70710677
        %v638 = vmul.f32 %v548, 0.70710677
        %v639 = vmul.f32 %v553, 0.70710677
        %v640 = vmul.f32 %v558, 0.70710677
        %v641 = vmul.f32 %v563, 0.70710677
        %v642 = vmul.f32 %v568, 0.70710677
        %v643 = vmul.f32 %v573, 0.70710677
        %v644 = vmul.f32 %v578, 0.70710677
        %v645 = vmul.f32 %v583, 0.70710677
        %v646 = vmul.f32 %v588, 0.70710677
        %v647 = vmul.f32 %v593, 0.70710677
        %v648 = vmul.f32 %v598, 0.70710677
        %v649 = vmul.f32 %v603, 0.70710677
        %v650 = vmul.f32 %v608, 0.70710677
        %v651 = vmul.f32 %v613, 0.70710677
        %v652 = vmul.f32 %v618, 0.70710677
        %v653 = verf.f32.pop %v637
        %v654 = verf.f32.pop %v638
        %v655 = verf.f32.pop %v639
        %v656 = verf.f32.pop %v640
        %v657 = verf.f32.pop %v641
        %v658 = verf.f32.pop %v642
        %v659 = verf.f32.pop %v643
        %v660 = verf.f32.pop %v644
        %v661 = verf.f32.pop %v645
        %v662 = verf.f32.pop %v646
        %v663 = verf.f32.pop %v647
        %v664 = verf.f32.pop %v648
        %v665 = verf.f32.pop %v649
        %v666 = verf.f32.pop %v650
        %v667 = verf.f32.pop %v651
        %v668 = verf.f32.pop %v652
        %v669 = vadd.f32 %v653, 1.0
        %v670 = vadd.f32 %v654, 1.0
        %v671 = vadd.f32 %v655, 1.0
        %v672 = vadd.f32 %v656, 1.0
        %v673 = vadd.f32 %v657, 1.0
        %v674 = vadd.f32 %v658, 1.0
        %v675 = vadd.f32 %v659, 1.0
        %v676 = vadd.f32 %v660, 1.0
        %v677 = vadd.f32 %v661, 1.0
        %v678 = vadd.f32 %v662, 1.0
        %v679 = vadd.f32 %v663, 1.0
        %v680 = vadd.f32 %v664, 1.0
        %v681 = vadd.f32 %v665, 1.0
        %v682 = vadd.f32 %v666, 1.0
        %v683 = vadd.f32 %v667, 1.0
        %v684 = vadd.f32 %v668, 1.0
        %v685 = vmul.f32 %v621, %v669
        %v686 = vmul.f32 %v622, %v670
        %v687 = vmul.f32 %v623, %v671
        %v688 = vmul.f32 %v624, %v672
        %v689 = vmul.f32 %v625, %v673
        %v690 = vmul.f32 %v626, %v674
        %v691 = vmul.f32 %v627, %v675
        %v692 = vmul.f32 %v628, %v676
        %v693 = vmul.f32 %v629, %v677
        %v694 = vmul.f32 %v630, %v678
        %v695 = vmul.f32 %v631, %v679
        %v696 = vmul.f32 %v632, %v680
        %v697 = vmul.f32 %v633, %v681
        %v698 = vmul.f32 %v634, %v682
        %v699 = vmul.f32 %v635, %v683
        %v700 = vmul.f32 %v636, %v684
        %v701 = vld [vmem:[#allocation5] sm:$0x7]
        %v702 = vld [vmem:[#allocation5 + $0x4] sm:$0x7]
        %v703 = vld [vmem:[#allocation5 + $0x8] sm:$0x7]
        %v704 = vlaneseq
        %v705 = vshrl.u32 %v704, 7
        %vm706 = vcmp.eq.s32.totalorder %v705, 0
        %v707 = vrot.slane %v685, 7
        %v708 = vrot.slane %v686, 7
        %v709 = vrot.slane %v687, 7
        %v710 = vrot.slane %v688, 7
        %v711 = vrot.slane %v689, 7
        %v712 = vrot.slane %v690, 7
        %v713 = vrot.slane %v691, 7
        %v714 = vrot.slane %v692, 7
        %v715 = vrot.slane %v693, 7
        %v716 = vrot.slane %v694, 7
        %v717 = vrot.slane %v695, 7
        %v718 = vrot.slane %v696, 7
        %v719 = vrot.slane %v697, 7
        %v720 = vrot.slane %v698, 7
        %v721 = vrot.slane %v699, 7
        %v722 = vrot.slane %v700, 7
        %v723 = vsel %vm706, 0.0, %v707
        %v724 = vsel %vm706, 0.0, %v708
        %v725 = vsel %vm706, 0.0, %v709
        %v726 = vsel %vm706, 0.0, %v710
        %v727 = vsel %vm706, 0.0, %v711
        %v728 = vsel %vm706, 0.0, %v712
        %v729 = vsel %vm706, 0.0, %v713
        %v730 = vsel %vm706, 0.0, %v714
        %v731 = vsel %vm706, 0.0, %v715
        %v732 = vsel %vm706, 0.0, %v716
        %v733 = vsel %vm706, 0.0, %v717
        %v734 = vsel %vm706, 0.0, %v718
        %v735 = vsel %vm706, 0.0, %v719
        %v736 = vsel %vm706, 0.0, %v720
        %v737 = vsel %vm706, 0.0, %v721
        %v738 = vsel %vm706, 0.0, %v722
        %vm739 = vcmp.eq.s32.totalorder %v705, 7
        %v740 = vrot.slane %v685, 1
        %v741 = vrot.slane %v686, 1
        %v742 = vrot.slane %v687, 1
        %v743 = vrot.slane %v688, 1
        %v744 = vrot.slane %v689, 1
        %v745 = vrot.slane %v690, 1
        %v746 = vrot.slane %v691, 1
        %v747 = vrot.slane %v692, 1
        %v748 = vrot.slane %v693, 1
        %v749 = vrot.slane %v694, 1
        %v750 = vrot.slane %v695, 1
        %v751 = vrot.slane %v696, 1
        %v752 = vrot.slane %v697, 1
        %v753 = vrot.slane %v698, 1
        %v754 = vrot.slane %v699, 1
        %v755 = vrot.slane %v700, 1
        %v756 = vsel %vm739, 0.0, %v740
        %v757 = vsel %vm739, 0.0, %v741
        %v758 = vsel %vm739, 0.0, %v742
        %v759 = vsel %vm739, 0.0, %v743
        %v760 = vsel %vm739, 0.0, %v744
        %v761 = vsel %vm739, 0.0, %v745
        %v762 = vsel %vm739, 0.0, %v746
        %v763 = vsel %vm739, 0.0, %v747
        %v764 = vsel %vm739, 0.0, %v748
        %v765 = vsel %vm739, 0.0, %v749
        %v766 = vsel %vm739, 0.0, %v750
        %v767 = vsel %vm739, 0.0, %v751
        %v768 = vsel %vm739, 0.0, %v752
        %v769 = vsel %vm739, 0.0, %v753
        %v770 = vsel %vm739, 0.0, %v754
        %v771 = vsel %vm739, 0.0, %v755
        %v772 = vlaneseq
        %v773 = vshrl.u32 %v772, 7
        %v774 = vsub.s32 0, %v773
        %v775 = vrot.slane %v702, %v774
        %v776 = vmul.f32 %v723, %v775
        %v777 = vmul.f32 %v724, %v775
        %v778 = vmul.f32 %v725, %v775
        %v779 = vmul.f32 %v726, %v775
        %v780 = vmul.f32 %v727, %v775
        %v781 = vmul.f32 %v728, %v775
        %v782 = vmul.f32 %v729, %v775
        %v783 = vmul.f32 %v730, %v775
        %v784 = vmul.f32 %v731, %v775
        %v785 = vmul.f32 %v732, %v775
        %v786 = vmul.f32 %v733, %v775
        %v787 = vmul.f32 %v734, %v775
        %v788 = vmul.f32 %v735, %v775
        %v789 = vmul.f32 %v736, %v775
        %v790 = vmul.f32 %v737, %v775
        %v791 = vmul.f32 %v738, %v775
        %v792 = vlaneseq
        %v793 = vshrl.u32 %v792, 7
        %v794 = vsub.s32 1, %v793
        %v795 = vrot.slane %v702, %v794
        %v796 = vmul.f32 %v685, %v795
        %v797 = vmul.f32 %v686, %v795
        %v798 = vmul.f32 %v687, %v795
        %v799 = vmul.f32 %v688, %v795
        %v800 = vmul.f32 %v689, %v795
        %v801 = vmul.f32 %v690, %v795
        %v802 = vmul.f32 %v691, %v795
        %v803 = vmul.f32 %v692, %v795
        %v804 = vmul.f32 %v693, %v795
        %v805 = vmul.f32 %v694, %v795
        %v806 = vmul.f32 %v695, %v795
        %v807 = vmul.f32 %v696, %v795
        %v808 = vmul.f32 %v697, %v795
        %v809 = vmul.f32 %v698, %v795
        %v810 = vmul.f32 %v699, %v795
        %v811 = vmul.f32 %v700, %v795
        %v812 = vadd.f32 %v776, %v796
        %v813 = vadd.f32 %v777, %v797
        %v814 = vadd.f32 %v778, %v798
        %v815 = vadd.f32 %v779, %v799
        %v816 = vadd.f32 %v780, %v800
        %v817 = vadd.f32 %v781, %v801
        %v818 = vadd.f32 %v782, %v802
        %v819 = vadd.f32 %v783, %v803
        %v820 = vadd.f32 %v784, %v804
        %v821 = vadd.f32 %v785, %v805
        %v822 = vadd.f32 %v786, %v806
        %v823 = vadd.f32 %v787, %v807
        %v824 = vadd.f32 %v788, %v808
        %v825 = vadd.f32 %v789, %v809
        %v826 = vadd.f32 %v790, %v810
        %v827 = vadd.f32 %v791, %v811
        %v828 = vlaneseq
        %v829 = vshrl.u32 %v828, 7
        %v830 = vsub.s32 2, %v829
        %v831 = vrot.slane %v702, %v830
        %v832 = vmul.f32 %v756, %v831
        %v833 = vmul.f32 %v757, %v831
        %v834 = vmul.f32 %v758, %v831
        %v835 = vmul.f32 %v759, %v831
        %v836 = vmul.f32 %v760, %v831
        %v837 = vmul.f32 %v761, %v831
        %v838 = vmul.f32 %v762, %v831
        %v839 = vmul.f32 %v763, %v831
        %v840 = vmul.f32 %v764, %v831
        %v841 = vmul.f32 %v765, %v831
        %v842 = vmul.f32 %v766, %v831
        %v843 = vmul.f32 %v767, %v831
        %v844 = vmul.f32 %v768, %v831
        %v845 = vmul.f32 %v769, %v831
        %v846 = vmul.f32 %v770, %v831
        %v847 = vmul.f32 %v771, %v831
        %v848 = vadd.f32 %v812, %v832
        %v849 = vadd.f32 %v813, %v833
        %v850 = vadd.f32 %v814, %v834
        %v851 = vadd.f32 %v815, %v835
        %v852 = vadd.f32 %v816, %v836
        %v853 = vadd.f32 %v817, %v837
        %v854 = vadd.f32 %v818, %v838
        %v855 = vadd.f32 %v819, %v839
        %v856 = vadd.f32 %v820, %v840
        %v857 = vadd.f32 %v821, %v841
        %v858 = vadd.f32 %v822, %v842
        %v859 = vadd.f32 %v823, %v843
        %v860 = vadd.f32 %v824, %v844
        %v861 = vadd.f32 %v825, %v845
        %v862 = vadd.f32 %v826, %v846
        %v863 = vadd.f32 %v827, %v847
        %v864 = vld [vmem:[%s4] sm:$0x1]
        %v866 = vlaneseq
        %v867 = vshrl.u32 %v866, 7
        %v868 = vsub.s32 0, %v867
        %v869 = vrot.slane %v864, %v868
        %v871 = vadd.f32 %v848, %v869
        %v872 = vadd.f32 %v849, %v869
        %v873 = vadd.f32 %v850, %v869
        %v874 = vadd.f32 %v851, %v869
        %v875 = vadd.f32 %v852, %v869
        %v876 = vadd.f32 %v853, %v869
        %v877 = vadd.f32 %v854, %v869
        %v878 = vadd.f32 %v855, %v869
        %v879 = vadd.f32 %v856, %v869
        %v880 = vadd.f32 %v857, %v869
        %v881 = vadd.f32 %v858, %v869
        %v882 = vadd.f32 %v859, %v869
        %v883 = vadd.f32 %v860, %v869
        %v884 = vadd.f32 %v861, %v869
        %v885 = vadd.f32 %v862, %v869
        %v886 = vadd.f32 %v863, %v869
        %v887 = vlaneseq
        %v888 = vshrl.u32 %v887, 7
        %v889 = vsub.s32 0, %v888
        %v890 = vrot.slane %v701, %v889
        %v891 = vmul.f32 %v723, %v890
        %v892 = vmul.f32 %v724, %v890
        %v893 = vmul.f32 %v725, %v890
        %v894 = vmul.f32 %v726, %v890
        %v895 = vmul.f32 %v727, %v890
        %v896 = vmul.f32 %v728, %v890
        %v897 = vmul.f32 %v729, %v890
        %v898 = vmul.f32 %v731, %v890
        %v899 = vmul.f32 %v732, %v890
        %v900 = vmul.f32 %v733, %v890
        %v901 = vmul.f32 %v734, %v890
        %v902 = vmul.f32 %v735, %v890
        %v903 = vmul.f32 %v736, %v890
        %v904 = vmul.f32 %v737, %v890
        %v905 = vlaneseq
        %v906 = vshrl.u32 %v905, 7
        %v907 = vsub.s32 1, %v906
        %v908 = vrot.slane %v701, %v907
        %v909 = vmul.f32 %v685, %v908
        %v910 = vmul.f32 %v686, %v908
        %v911 = vmul.f32 %v687, %v908
        %v912 = vmul.f32 %v688, %v908
        %v913 = vmul.f32 %v689, %v908
        %v914 = vmul.f32 %v690, %v908
        %v915 = vmul.f32 %v691, %v908
        %v916 = vmul.f32 %v693, %v908
        %v917 = vmul.f32 %v694, %v908
        %v918 = vmul.f32 %v695, %v908
        %v919 = vmul.f32 %v696, %v908
        %v920 = vmul.f32 %v697, %v908
        %v921 = vmul.f32 %v698, %v908
        %v922 = vmul.f32 %v699, %v908
        %v923 = vadd.f32 %v891, %v909
        %v924 = vadd.f32 %v892, %v910
        %v925 = vadd.f32 %v893, %v911
        %v926 = vadd.f32 %v894, %v912
        %v927 = vadd.f32 %v895, %v913
        %v928 = vadd.f32 %v896, %v914
        %v929 = vadd.f32 %v897, %v915
        %v930 = vadd.f32 %v898, %v916
        %v931 = vadd.f32 %v899, %v917
        %v932 = vadd.f32 %v900, %v918
        %v933 = vadd.f32 %v901, %v919
        %v934 = vadd.f32 %v902, %v920
        %v935 = vadd.f32 %v903, %v921
        %v936 = vadd.f32 %v904, %v922
        %v937 = vlaneseq
        %v938 = vshrl.u32 %v937, 7
        %v939 = vsub.s32 2, %v938
        %v940 = vrot.slane %v701, %v939
        %v941 = vmul.f32 %v756, %v940
        %v942 = vmul.f32 %v757, %v940
        %v943 = vmul.f32 %v758, %v940
        %v944 = vmul.f32 %v759, %v940
        %v945 = vmul.f32 %v760, %v940
        %v946 = vmul.f32 %v761, %v940
        %v947 = vmul.f32 %v762, %v940
        %v948 = vmul.f32 %v764, %v940
        %v949 = vmul.f32 %v765, %v940
        %v950 = vmul.f32 %v766, %v940
        %v951 = vmul.f32 %v767, %v940
        %v952 = vmul.f32 %v768, %v940
        %v953 = vmul.f32 %v769, %v940
        %v954 = vmul.f32 %v770, %v940
        %v955 = vadd.f32 %v923, %v941
        %v956 = vadd.f32 %v924, %v942
        %v957 = vadd.f32 %v925, %v943
        %v958 = vadd.f32 %v926, %v944
        %v959 = vadd.f32 %v927, %v945
        %v960 = vadd.f32 %v928, %v946
        %v961 = vadd.f32 %v929, %v947
        %v962 = vadd.f32 %v930, %v948
        %v963 = vadd.f32 %v931, %v949
        %v964 = vadd.f32 %v932, %v950
        %v965 = vadd.f32 %v933, %v951
        %v966 = vadd.f32 %v934, %v952
        %v967 = vadd.f32 %v935, %v953
        %v968 = vadd.f32 %v936, %v954
        %v969 = vadd.f32 %v871, 0.0
        %v970 = vadd.f32 %v872, %v955
        %v971 = vadd.f32 %v873, %v956
        %v972 = vadd.f32 %v874, %v957
        %v973 = vadd.f32 %v875, %v958
        %v974 = vadd.f32 %v876, %v959
        %v975 = vadd.f32 %v877, %v960
        %v976 = vadd.f32 %v878, %v961
        %v977 = vadd.f32 %v879, 0.0
        %v978 = vadd.f32 %v880, %v962
        %v979 = vadd.f32 %v881, %v963
        %v980 = vadd.f32 %v882, %v964
        %v981 = vadd.f32 %v883, %v965
        %v982 = vadd.f32 %v884, %v966
        %v983 = vadd.f32 %v885, %v967
        %v984 = vadd.f32 %v886, %v968
        %v985 = vlaneseq
        %v986 = vshrl.u32 %v985, 7
        %v987 = vsub.s32 0, %v986
        %v988 = vrot.slane %v703, %v987
        %v989 = vmul.f32 %v724, %v988
        %v990 = vmul.f32 %v725, %v988
        %v991 = vmul.f32 %v726, %v988
        %v992 = vmul.f32 %v727, %v988
        %v993 = vmul.f32 %v728, %v988
        %v994 = vmul.f32 %v729, %v988
        %v995 = vmul.f32 %v730, %v988
        %v996 = vmul.f32 %v732, %v988
        %v997 = vmul.f32 %v733, %v988
        %v998 = vmul.f32 %v734, %v988
        %v999 = vmul.f32 %v735, %v988
        %v1000 = vmul.f32 %v736, %v988
        %v1001 = vmul.f32 %v737, %v988
        %v1002 = vmul.f32 %v738, %v988
        %v1003 = vlaneseq
        %v1004 = vshrl.u32 %v1003, 7
        %v1005 = vsub.s32 1, %v1004
        %v1006 = vrot.slane %v703, %v1005
        %v1007 = vmul.f32 %v686, %v1006
        %v1008 = vmul.f32 %v687, %v1006
        %v1009 = vmul.f32 %v688, %v1006
        %v1010 = vmul.f32 %v689, %v1006
        %v1011 = vmul.f32 %v690, %v1006
        %v1012 = vmul.f32 %v691, %v1006
        %v1013 = vmul.f32 %v692, %v1006
        %v1014 = vmul.f32 %v694, %v1006
        %v1015 = vmul.f32 %v695, %v1006
        %v1016 = vmul.f32 %v696, %v1006
        %v1017 = vmul.f32 %v697, %v1006
        %v1018 = vmul.f32 %v698, %v1006
        %v1019 = vmul.f32 %v699, %v1006
        %v1020 = vmul.f32 %v700, %v1006
        %v1021 = vadd.f32 %v989, %v1007
        %v1022 = vadd.f32 %v990, %v1008
        %v1023 = vadd.f32 %v991, %v1009
        %v1024 = vadd.f32 %v992, %v1010
        %v1025 = vadd.f32 %v993, %v1011
        %v1026 = vadd.f32 %v994, %v1012
        %v1027 = vadd.f32 %v995, %v1013
        %v1028 = vadd.f32 %v996, %v1014
        %v1029 = vadd.f32 %v997, %v1015
        %v1030 = vadd.f32 %v998, %v1016
        %v1031 = vadd.f32 %v999, %v1017
        %v1032 = vadd.f32 %v1000, %v1018
        %v1033 = vadd.f32 %v1001, %v1019
        %v1034 = vadd.f32 %v1002, %v1020
        %v1035 = vlaneseq
        %v1036 = vshrl.u32 %v1035, 7
        %v1037 = vsub.s32 2, %v1036
        %v1038 = vrot.slane %v703, %v1037
        %v1039 = vmul.f32 %v757, %v1038
        %v1040 = vmul.f32 %v758, %v1038
        %v1041 = vmul.f32 %v759, %v1038
        %v1042 = vmul.f32 %v760, %v1038
        %v1043 = vmul.f32 %v761, %v1038
        %v1044 = vmul.f32 %v762, %v1038
        %v1045 = vmul.f32 %v763, %v1038
        %v1046 = vmul.f32 %v765, %v1038
        %v1047 = vmul.f32 %v766, %v1038
        %v1048 = vmul.f32 %v767, %v1038
        %v1049 = vmul.f32 %v768, %v1038
        %v1050 = vmul.f32 %v769, %v1038
        %v1051 = vmul.f32 %v770, %v1038
        %v1052 = vmul.f32 %v771, %v1038
        %v1053 = vadd.f32 %v1021, %v1039
        %v1054 = vadd.f32 %v1022, %v1040
        %v1055 = vadd.f32 %v1023, %v1041
        %v1056 = vadd.f32 %v1024, %v1042
        %v1057 = vadd.f32 %v1025, %v1043
        %v1058 = vadd.f32 %v1026, %v1044
        %v1059 = vadd.f32 %v1027, %v1045
        %v1060 = vadd.f32 %v1028, %v1046
        %v1061 = vadd.f32 %v1029, %v1047
        %v1062 = vadd.f32 %v1030, %v1048
        %v1063 = vadd.f32 %v1031, %v1049
        %v1064 = vadd.f32 %v1032, %v1050
        %v1065 = vadd.f32 %v1033, %v1051
        %v1066 = vadd.f32 %v1034, %v1052
        %v1067 = vadd.f32 %v969, %v1053
        %v1068 = vadd.f32 %v970, %v1054
        %v1069 = vadd.f32 %v971, %v1055
        %v1070 = vadd.f32 %v972, %v1056
        %v1071 = vadd.f32 %v973, %v1057
        %v1072 = vadd.f32 %v974, %v1058
        %v1073 = vadd.f32 %v975, %v1059
        %v1074 = vadd.f32 %v976, 0.0
        %v1075 = vadd.f32 %v977, %v1060
        %v1076 = vadd.f32 %v978, %v1061
        %v1077 = vadd.f32 %v979, %v1062
        %v1078 = vadd.f32 %v980, %v1063
        %v1079 = vadd.f32 %v981, %v1064
        %v1080 = vadd.f32 %v982, %v1065
        %v1081 = vadd.f32 %v983, %v1066
        %v1082 = vadd.f32 %v984, 0.0
        %v1083 = vmul.f32 %v1067, 0.5
        %v1084 = vmul.f32 %v1068, 0.5
        %v1085 = vmul.f32 %v1069, 0.5
        %v1086 = vmul.f32 %v1070, 0.5
        %v1087 = vmul.f32 %v1071, 0.5
        %v1088 = vmul.f32 %v1072, 0.5
        %v1089 = vmul.f32 %v1073, 0.5
        %v1090 = vmul.f32 %v1074, 0.5
        %v1091 = vmul.f32 %v1075, 0.5
        %v1092 = vmul.f32 %v1076, 0.5
        %v1093 = vmul.f32 %v1077, 0.5
        %v1094 = vmul.f32 %v1078, 0.5
        %v1095 = vmul.f32 %v1079, 0.5
        %v1096 = vmul.f32 %v1080, 0.5
        %v1097 = vmul.f32 %v1081, 0.5
        %v1098 = vmul.f32 %v1082, 0.5
        %v1099 = vmul.f32 %v1067, 0.70710677
        %v1100 = vmul.f32 %v1068, 0.70710677
        %v1101 = vmul.f32 %v1069, 0.70710677
        %v1102 = vmul.f32 %v1070, 0.70710677
        %v1103 = vmul.f32 %v1071, 0.70710677
        %v1104 = vmul.f32 %v1072, 0.70710677
        %v1105 = vmul.f32 %v1073, 0.70710677
        %v1106 = vmul.f32 %v1074, 0.70710677
        %v1107 = vmul.f32 %v1075, 0.70710677
        %v1108 = vmul.f32 %v1076, 0.70710677
        %v1109 = vmul.f32 %v1077, 0.70710677
        %v1110 = vmul.f32 %v1078, 0.70710677
        %v1111 = vmul.f32 %v1079, 0.70710677
        %v1112 = vmul.f32 %v1080, 0.70710677
        %v1113 = vmul.f32 %v1081, 0.70710677
        %v1114 = vmul.f32 %v1082, 0.70710677
        %v1115 = verf.f32.pop %v1099
        %v1116 = verf.f32.pop %v1100
        %v1117 = verf.f32.pop %v1101
        %v1118 = verf.f32.pop %v1102
        %v1119 = verf.f32.pop %v1103
        %v1120 = verf.f32.pop %v1104
        %v1121 = verf.f32.pop %v1105
        %v1122 = verf.f32.pop %v1106
        %v1123 = verf.f32.pop %v1107
        %v1124 = verf.f32.pop %v1108
        %v1125 = verf.f32.pop %v1109
        %v1126 = verf.f32.pop %v1110
        %v1127 = verf.f32.pop %v1111
        %v1128 = verf.f32.pop %v1112
        %v1129 = verf.f32.pop %v1113
        %v1130 = verf.f32.pop %v1114
        %v1131 = vadd.f32 %v1115, 1.0
        %v1132 = vadd.f32 %v1116, 1.0
        %v1133 = vadd.f32 %v1117, 1.0
        %v1134 = vadd.f32 %v1118, 1.0
        %v1135 = vadd.f32 %v1119, 1.0
        %v1136 = vadd.f32 %v1120, 1.0
        %v1137 = vadd.f32 %v1121, 1.0
        %v1138 = vadd.f32 %v1122, 1.0
        %v1139 = vadd.f32 %v1123, 1.0
        %v1140 = vadd.f32 %v1124, 1.0
        %v1141 = vadd.f32 %v1125, 1.0
        %v1142 = vadd.f32 %v1126, 1.0
        %v1143 = vadd.f32 %v1127, 1.0
        %v1144 = vadd.f32 %v1128, 1.0
        %v1145 = vadd.f32 %v1129, 1.0
        %v1146 = vadd.f32 %v1130, 1.0
        %v1147 = vmul.f32 %v1083, %v1131
        %v1148 = vmul.f32 %v1084, %v1132
        %v1149 = vmul.f32 %v1085, %v1133
        %v1150 = vmul.f32 %v1086, %v1134
        %v1151 = vmul.f32 %v1087, %v1135
        %v1152 = vmul.f32 %v1088, %v1136
        %v1153 = vmul.f32 %v1089, %v1137
        %v1154 = vmul.f32 %v1090, %v1138
        %v1155 = vmul.f32 %v1091, %v1139
        %v1156 = vmul.f32 %v1092, %v1140
        %v1157 = vmul.f32 %v1093, %v1141
        %v1158 = vmul.f32 %v1094, %v1142
        %v1159 = vmul.f32 %v1095, %v1143
        %v1160 = vmul.f32 %v1096, %v1144
        %v1161 = vmul.f32 %v1097, %v1145
        %v1162 = vmul.f32 %v1098, %v1146
        %v1163 = vadd.f32 %v1147, %v1148
        %v1164 = vadd.f32 %v1163, %v1149
        %v1165 = vadd.f32 %v1164, %v1150
        %v1166 = vadd.f32 %v1165, %v1151
        %v1167 = vadd.f32 %v1166, %v1152
        %v1168 = vadd.f32 %v1167, %v1153
        %v1169 = vadd.f32 %v1168, %v1154
        %v1170 = vrot.slane %v1169, 4
        %v1171 = vadd.f32 %v1169, %v1170
        %v1172 = vrot.slane %v1171, 2
        %v1173 = vadd.f32 %v1171, %v1172
        %v1174 = vrot.slane %v1173, 1
        %v1175 = vadd.f32 %v1173, %v1174
        %v1176 = vadd.f32 %v1155, %v1156
        %v1177 = vadd.f32 %v1176, %v1157
        %v1178 = vadd.f32 %v1177, %v1158
        %v1179 = vadd.f32 %v1178, %v1159
        %v1180 = vadd.f32 %v1179, %v1160
        %v1181 = vadd.f32 %v1180, %v1161
        %v1182 = vadd.f32 %v1181, %v1162
        %v1183 = vrot.slane %v1182, 4
        %v1184 = vadd.f32 %v1182, %v1183
        %v1185 = vrot.slane %v1184, 2
        %v1186 = vadd.f32 %v1184, %v1185
        %v1187 = vrot.slane %v1186, 1
        %v1188 = vadd.f32 %v1186, %v1187
        %v1189 = vrcp.pop 64.0
        %v1190 = vmul.f32 %v1175, %v1189
        %v1191 = vmul.f32 %v1188, %v1189
        %v1192 = vld [vmem:[%s5] sm:$0xff]
        %v1193 = vld [vmem:[%s5 + $0x8] sm:$0xff]
        %v1194 = vld [vmem:[%s5 + $0x10] sm:$0xff]
        %v1195 = vld [vmem:[%s5 + $0x18] sm:$0xff]
        %v1196 = vld [vmem:[%s5 + $0x20] sm:$0xff]
        %v1197 = vld [vmem:[%s5 + $0x28] sm:$0xff]
        %v1198 = vld [vmem:[%s5 + $0x30] sm:$0xff]
        %v1199 = vld [vmem:[%s5 + $0x38] sm:$0xff]
        %v1200 = vld [vmem:[%s5 + $0x40] sm:$0xff]
        %v1201 = vld [vmem:[%s5 + $0x48] sm:$0xff]
        %v1202 = vld [vmem:[%s5 + $0x50] sm:$0xff]
        %v1203 = vld [vmem:[%s5 + $0x58] sm:$0xff]
        %v1204 = vld [vmem:[%s5 + $0x60] sm:$0xff]
        %v1205 = vld [vmem:[%s5 + $0x68] sm:$0xff]
        %v1206 = vld [vmem:[%s5 + $0x70] sm:$0xff]
        %v1207 = vld [vmem:[%s5 + $0x78] sm:$0xff]
        %v1208 = vld [vmem:[%s6] sm:$0x1]
        %v1210 = vlaneseq
        %v1211 = vshrl.u32 %v1210, 7
        %v1212 = vsub.s32 0, %v1211
        %v1213 = vrot.slane %v1208, %v1212
        %vm1217 = vcmask 1041409
        %v1218 = vsel %vm1217, %v1191, %v1190
        %1220 = vmatprep.subr.mxu0 0.0
        %1221 = vmatpush1.msra.mxu0 %v1192
        %1222 = vmatprep.subr.mxu0 0.0
        %1223 = vmatpush1.msra.mxu0 %v1193
        %1224 = vmatprep.subr.mxu0 0.0
        %1225 = vmatpush1.msra.mxu0 %v1194
        %1226 = vmatprep.subr.mxu0 0.0
        %1227 = vmatpush1.msra.mxu0 %v1195
        %1228 = vmatprep.subr.mxu0 0.0
        %1229 = vmatpush1.msra.mxu0 %v1196
        %1230 = vmatprep.subr.mxu0 0.0
        %1231 = vmatpush1.msra.mxu0 %v1197
        %1232 = vmatprep.subr.mxu0 0.0
        %1233 = vmatpush1.msra.mxu0 %v1198
        %1234 = vmatprep.subr.mxu0 0.0
        %1235 = vmatpush1.msra.mxu0 %v1199
        %1236 = vmatprep.subr.mxu0 0.0
        %1237 = vmatpush1.msra.mxu0 %v1200
        %1238 = vmatprep.subr.mxu0 0.0
        %1239 = vmatpush1.msra.mxu0 %v1201
        %1240 = vmatprep.subr.mxu0 0.0
        %1241 = vmatpush1.msra.mxu0 %v1202
        %1242 = vmatprep.subr.mxu0 0.0
        %1243 = vmatpush1.msra.mxu0 %v1203
        %1244 = vmatprep.subr.mxu0 0.0
        %1245 = vmatpush1.msra.mxu0 %v1204
        %1246 = vmatprep.subr.mxu0 0.0
        %1247 = vmatpush1.msra.mxu0 %v1205
        %1248 = vmatprep.subr.mxu0 0.0
        %1249 = vmatpush1.msra.mxu0 %v1206
        %1250 = vmatprep.subr.mxu0 0.0
        %1251 = vmatpush1.msra.mxu0 %v1207
        %1252 = vmatprep.subr.mxu0 0.0
        %1253 = vmatpush1.msra.mxu0 0.0
        %1254 = vmatprep.subr.mxu0 0.0
        %1255 = vmatpush1.msra.mxu0 0.0
        %1256 = vmatprep.subr.mxu0 0.0
        %1257 = vmatpush1.msra.mxu0 0.0
        %1258 = vmatprep.subr.mxu0 0.0
        %1259 = vmatpush1.msra.mxu0 0.0
        %1260 = vmatprep.subr.mxu0 0.0
        %1261 = vmatpush1.msra.mxu0 0.0
        %1262 = vmatprep.subr.mxu0 0.0
        %1263 = vmatpush1.msra.mxu0 0.0
        %1264 = vmatprep.subr.mxu0 0.0
        %1265 = vmatpush1.msra.mxu0 0.0
        %1266 = vmatprep.subr.mxu0 0.0
        %1267 = vmatpush1.msra.mxu0 0.0
        %1268 = vmatprep.subr.mxu0 0.0
        %1269 = vmatpush1.msra.mxu0 0.0
        %1270 = vmatprep.subr.mxu0 0.0
        %1271 = vmatpush1.msra.mxu0 0.0
        %1272 = vmatprep.subr.mxu0 0.0
        %1273 = vmatpush1.msra.mxu0 0.0
        %1274 = vmatprep.subr.mxu0 0.0
        %1275 = vmatpush1.msra.mxu0 0.0
        %1276 = vmatprep.subr.mxu0 0.0
        %1277 = vmatpush1.msra.mxu0 0.0
        %1278 = vmatprep.subr.mxu0 0.0
        %1279 = vmatpush1.msra.mxu0 0.0
        %1280 = vmatprep.subr.mxu0 0.0
        %1281 = vmatpush1.msra.mxu0 0.0
        %1282 = vmatprep.subr.mxu0 0.0
        %1283 = vmatpush1.msra.mxu0 0.0
        %1284 = vmatprep.mubr.f32.mxu0 0.0
        %1285 = vmatmul.mubr.f32.gmra.mrb[0].mxu0 %v1218
        %v1286 = vpop.f32.mrb[0].mxu0
        %v1287 = vadd.f32 %v1213, %v1286
        %v1288 = vpop.f32.mrb[0].mxu0
        %1289 = vdwg.mxu0
        %v1290 = vmax.f32 %v1287, 0.0
        %v1291 = vld [vmem:[%s7] sm:$0xff]
        %v1292 = vld [vmem:[%s7 + $0x8] sm:$0xff]
        %v1293 = vld [vmem:[%s7 + $0x10] sm:$0xff]
        %v1294 = vld [vmem:[%s7 + $0x18] sm:$0xff]
        %v1295 = vld [vmem:[%s8] sm:$0x1]
        %v1297 = vlaneseq
        %v1298 = vshrl.u32 %v1297, 7
        %v1299 = vsub.s32 0, %v1298
        %v1300 = vrot.slane %v1295, %v1299
        %vm1302 = vcmask 261120
        %v1304 = vsel %vm1302, %v1290, 0
        %1306 = vmatprep.subr.mxu0 0.0
        %1307 = vmatpush1.msra.mxu0 %v1291
        %1308 = vmatprep.subr.mxu0 0.0
        %1309 = vmatpush1.msra.mxu0 %v1292
        %1310 = vmatprep.subr.mxu0 0.0
        %1311 = vmatpush1.msra.mxu0 %v1293
        %1312 = vmatprep.subr.mxu0 0.0
        %1313 = vmatpush1.msra.mxu0 %v1294
        %1314 = vmatprep.subr.mxu0 0.0
        %1315 = vmatpush1.msra.mxu0 0.0
        %1316 = vmatprep.subr.mxu0 0.0
        %1317 = vmatpush1.msra.mxu0 0.0
        %1318 = vmatprep.subr.mxu0 0.0
        %1319 = vmatpush1.msra.mxu0 0.0
        %1320 = vmatprep.subr.mxu0 0.0
        %1321 = vmatpush1.msra.mxu0 0.0
        %1322 = vmatprep.subr.mxu0 0.0
        %1323 = vmatpush1.msra.mxu0 0.0
        %1324 = vmatprep.subr.mxu0 0.0
        %1325 = vmatpush1.msra.mxu0 0.0
        %1326 = vmatprep.subr.mxu0 0.0
        %1327 = vmatpush1.msra.mxu0 0.0
        %1328 = vmatprep.subr.mxu0 0.0
        %1329 = vmatpush1.msra.mxu0 0.0
        %1330 = vmatprep.subr.mxu0 0.0
        %1331 = vmatpush1.msra.mxu0 0.0
        %1332 = vmatprep.subr.mxu0 0.0
        %1333 = vmatpush1.msra.mxu0 0.0
        %1334 = vmatprep.subr.mxu0 0.0
        %1335 = vmatpush1.msra.mxu0 0.0
        %1336 = vmatprep.subr.mxu0 0.0
        %1337 = vmatpush1.msra.mxu0 0.0
        %1338 = vmatprep.subr.mxu0 0.0
        %1339 = vmatpush1.msra.mxu0 0.0
        %1340 = vmatprep.subr.mxu0 0.0
        %1341 = vmatpush1.msra.mxu0 0.0
        %1342 = vmatprep.subr.mxu0 0.0
        %1343 = vmatpush1.msra.mxu0 0.0
        %1344 = vmatprep.subr.mxu0 0.0
        %1345 = vmatpush1.msra.mxu0 0.0
        %1346 = vmatprep.subr.mxu0 0.0
        %1347 = vmatpush1.msra.mxu0 0.0
        %1348 = vmatprep.subr.mxu0 0.0
        %1349 = vmatpush1.msra.mxu0 0.0
        %1350 = vmatprep.subr.mxu0 0.0
        %1351 = vmatpush1.msra.mxu0 0.0
        %1352 = vmatprep.subr.mxu0 0.0
        %1353 = vmatpush1.msra.mxu0 0.0
        %1354 = vmatprep.subr.mxu0 0.0
        %1355 = vmatpush1.msra.mxu0 0.0
        %1356 = vmatprep.subr.mxu0 0.0
        %1357 = vmatpush1.msra.mxu0 0.0
        %1358 = vmatprep.subr.mxu0 0.0
        %1359 = vmatpush1.msra.mxu0 0.0
        %1360 = vmatprep.subr.mxu0 0.0
        %1361 = vmatpush1.msra.mxu0 0.0
        %1362 = vmatprep.subr.mxu0 0.0
        %1363 = vmatpush1.msra.mxu0 0.0
        %1364 = vmatprep.subr.mxu0 0.0
        %1365 = vmatpush1.msra.mxu0 0.0
        %1366 = vmatprep.subr.mxu0 0.0
        %1367 = vmatpush1.msra.mxu0 0.0
        %1368 = vmatprep.subr.mxu0 0.0
        %1369 = vmatpush1.msra.mxu0 0.0
        %1370 = vmatprep.mubr.f32.mxu0 0.0
        %1371 = vmatmul.mubr.f32.gmra.mrb[0].mxu0 %v1304
        %v1372 = vpop.f32.mrb[0].mxu0
        %v1373 = vadd.f32 %v1300, %v1372
        %v1374 = vpop.f32.mrb[0].mxu0
        %1375 = vdwg.mxu0
        %v1376 = vxor.u32 %v1373, 2147483648
        %v1377 = vmul.f32 %v1376, 1.442695
        %v1378 = vpow.pop %v1377
        %v1379 = vadd.f32 %v1378, 1.0
        %v1380 = vrcp.pop %v1379
        %v1381 = vmul.f32 1.0, %v1380
        %v1384 = vunpack.c.l.s4 1966171168
        %v1385 = vunpack.c.0.s8 %v1384
        %v1386 = vlaneseq
        %v1387 = vshrl.u32 %v1386, 7
        %v1388 = vsub.s32 %v1385, %v1387
        %v1389 = vrot.slane %v1381, %v1388
        %v1390 = vcombine.high %v1389, %v1389
        %v1392 = vunpack.c.l.s4 1966171168
        %v1393 = vunpack.c.0.s8 %v1392
        %v1394 = vlaneseq
        %v1395 = vshrl.u32 %v1394, 7
        %v1396 = vsub.s32 %v1393, %v1395
        %v1397 = vrot.slane %v1389, %v1396
        %v1399 = vunpack.c.l.s4 1966171168
        %v1400 = vunpack.c.0.s8 %v1399
        %v1401 = vlaneseq
        %v1402 = vshrl.u32 %v1401, 7
        %v1403 = vsub.s32 %v1400, %v1402
        %v1404 = vrot.slane %v1390, %v1403
        %v1405 = vlaneseq
        %v1406 = vshrl.u32 %v1405, 7
        %v1407 = vsub.s32 0, %v1406
        %v1408 = vrot.slane %v1397, %v1407
        %v1409 = vlaneseq
        %v1410 = vshrl.u32 %v1409, 7
        %v1411 = vsub.s32 0, %v1410
        %v1412 = vrot.slane %v1404, %v1411
        %v1415 = vmul.f32 %v1147, %v1408
        %v1416 = vmul.f32 %v1148, %v1408
        %v1417 = vmul.f32 %v1149, %v1408
        %v1418 = vmul.f32 %v1150, %v1408
        %v1419 = vmul.f32 %v1151, %v1408
        %v1420 = vmul.f32 %v1152, %v1408
        %v1421 = vmul.f32 %v1153, %v1408
        %v1422 = vmul.f32 %v1154, %v1408
        %v1423 = vmul.f32 %v1155, %v1412
        %v1424 = vmul.f32 %v1156, %v1412
        %v1425 = vmul.f32 %v1157, %v1412
        %v1426 = vmul.f32 %v1158, %v1412
        %v1427 = vmul.f32 %v1159, %v1412
        %v1428 = vmul.f32 %v1160, %v1412
        %v1429 = vmul.f32 %v1161, %v1412
        %v1430 = vmul.f32 %v1162, %v1412
        %v1431 = vld [vmem:[#allocation7] sm:$0xff]
        %v1432 = vld [vmem:[#allocation7 + $0x8] sm:$0xff]
        %v1433 = vld [vmem:[#allocation7 + $0x10] sm:$0xff]
        %v1434 = vld [vmem:[#allocation7 + $0x18] sm:$0xff]
        %v1435 = vld [vmem:[#allocation7 + $0x20] sm:$0xff]
        %v1436 = vld [vmem:[#allocation7 + $0x28] sm:$0xff]
        %v1437 = vld [vmem:[#allocation7 + $0x30] sm:$0xff]
        %v1438 = vld [vmem:[#allocation7 + $0x38] sm:$0xff]
        %v1439 = vld [vmem:[#allocation7 + $0x40] sm:$0xff]
        %v1440 = vld [vmem:[#allocation7 + $0x48] sm:$0xff]
        %v1441 = vld [vmem:[#allocation7 + $0x50] sm:$0xff]
        %v1442 = vld [vmem:[#allocation7 + $0x58] sm:$0xff]
        %v1443 = vld [vmem:[#allocation7 + $0x60] sm:$0xff]
        %v1444 = vld [vmem:[#allocation7 + $0x68] sm:$0xff]
        %v1445 = vld [vmem:[#allocation7 + $0x70] sm:$0xff]
        %v1446 = vld [vmem:[#allocation7 + $0x78] sm:$0xff]
        %v1447 = vld [vmem:[%s10] sm:$0x1]
        %v1449 = vlaneseq
        %v1450 = vshrl.u32 %v1449, 7
        %v1451 = vsub.s32 0, %v1450
        %v1452 = vrot.slane %v1447, %v1451
        %1454 = vmatprep.subr.mxu0 0.0
        %1455 = vmatpush1.msra.mxu0 %v1431
        %1456 = vmatprep.subr.mxu0 0.0
        %1457 = vmatpush1.msra.mxu0 %v1432
        %1458 = vmatprep.subr.mxu0 0.0
        %1459 = vmatpush1.msra.mxu0 %v1433
        %1460 = vmatprep.subr.mxu0 0.0
        %1461 = vmatpush1.msra.mxu0 %v1434
        %1462 = vmatprep.subr.mxu0 0.0
        %1463 = vmatpush1.msra.mxu0 %v1435
        %1464 = vmatprep.subr.mxu0 0.0
        %1465 = vmatpush1.msra.mxu0 %v1436
        %1466 = vmatprep.subr.mxu0 0.0
        %1467 = vmatpush1.msra.mxu0 %v1437
        %1468 = vmatprep.subr.mxu0 0.0
        %1469 = vmatpush1.msra.mxu0 %v1438
        %1470 = vmatprep.subr.mxu0 0.0
        %1471 = vmatpush1.msra.mxu0 %v1439
        %1472 = vmatprep.subr.mxu0 0.0
        %1473 = vmatpush1.msra.mxu0 %v1440
        %1474 = vmatprep.subr.mxu0 0.0
        %1475 = vmatpush1.msra.mxu0 %v1441
        %1476 = vmatprep.subr.mxu0 0.0
        %1477 = vmatpush1.msra.mxu0 %v1442
        %1478 = vmatprep.subr.mxu0 0.0
        %1479 = vmatpush1.msra.mxu0 %v1443
        %1480 = vmatprep.subr.mxu0 0.0
        %1481 = vmatpush1.msra.mxu0 %v1444
        %1482 = vmatprep.subr.mxu0 0.0
        %1483 = vmatpush1.msra.mxu0 %v1445
        %1484 = vmatprep.subr.mxu0 0.0
        %1485 = vmatpush1.msra.mxu0 %v1446
        %1486 = vmatprep.subr.mxu0 0.0
        %1487 = vmatpush1.msra.mxu0 0.0
        %1488 = vmatprep.subr.mxu0 0.0
        %1489 = vmatpush1.msra.mxu0 0.0
        %1490 = vmatprep.subr.mxu0 0.0
        %1491 = vmatpush1.msra.mxu0 0.0
        %1492 = vmatprep.subr.mxu0 0.0
        %1493 = vmatpush1.msra.mxu0 0.0
        %1494 = vmatprep.subr.mxu0 0.0
        %1495 = vmatpush1.msra.mxu0 0.0
        %1496 = vmatprep.subr.mxu0 0.0
        %1497 = vmatpush1.msra.mxu0 0.0
        %1498 = vmatprep.subr.mxu0 0.0
        %1499 = vmatpush1.msra.mxu0 0.0
        %1500 = vmatprep.subr.mxu0 0.0
        %1501 = vmatpush1.msra.mxu0 0.0
        %1502 = vmatprep.subr.mxu0 0.0
        %1503 = vmatpush1.msra.mxu0 0.0
        %1504 = vmatprep.subr.mxu0 0.0
        %1505 = vmatpush1.msra.mxu0 0.0
        %1506 = vmatprep.subr.mxu0 0.0
        %1507 = vmatpush1.msra.mxu0 0.0
        %1508 = vmatprep.subr.mxu0 0.0
        %1509 = vmatpush1.msra.mxu0 0.0
        %1510 = vmatprep.subr.mxu0 0.0
        %1511 = vmatpush1.msra.mxu0 0.0
        %1512 = vmatprep.subr.mxu0 0.0
        %1513 = vmatpush1.msra.mxu0 0.0
        %1514 = vmatprep.subr.mxu0 0.0
        %1515 = vmatpush1.msra.mxu0 0.0
        %1516 = vmatprep.subr.mxu0 0.0
        %1517 = vmatpush1.msra.mxu0 0.0
        %1518 = vmatprep.mubr.f32.mxu0 0.0
        %1519 = vmatmul.mubr.f32.gmra.mrb[0].mxu0 %v1415
        %v1520 = vpop.f32.mrb[0].mxu0
        %v1521 = vadd.f32 %v1452, %v1520
        %v1522 = vpop.f32.mrb[0].mxu0
        %1523 = vmatprep.mubr.f32.mxu0 0.0
        %1524 = vmatmul.mubr.f32.gmra.mrb[0].mxu0 %v1416
        %v1525 = vpop.f32.mrb[0].mxu0
        %v1526 = vadd.f32 %v1452, %v1525
        %v1527 = vpop.f32.mrb[0].mxu0
        %1528 = vmatprep.mubr.f32.mxu0 0.0
        %1529 = vmatmul.mubr.f32.gmra.mrb[0].mxu0 %v1417
        %v1530 = vpop.f32.mrb[0].mxu0
        %v1531 = vadd.f32 %v1452, %v1530
        %v1532 = vpop.f32.mrb[0].mxu0
        %1533 = vmatprep.mubr.f32.mxu0 0.0
        %1534 = vmatmul.mubr.f32.gmra.mrb[0].mxu0 %v1418
        %v1535 = vpop.f32.mrb[0].mxu0
        %v1536 = vadd.f32 %v1452, %v1535
        %v1537 = vpop.f32.mrb[0].mxu0
        %1538 = vmatprep.mubr.f32.mxu0 0.0
        %1539 = vmatmul.mubr.f32.gmra.mrb[0].mxu0 %v1419
        %v1540 = vpop.f32.mrb[0].mxu0
        %v1541 = vadd.f32 %v1452, %v1540
        %v1542 = vpop.f32.mrb[0].mxu0
        %1543 = vmatprep.mubr.f32.mxu0 0.0
        %1544 = vmatmul.mubr.f32.gmra.mrb[0].mxu0 %v1420
        %v1545 = vpop.f32.mrb[0].mxu0
        %v1546 = vadd.f32 %v1452, %v1545
        %v1547 = vpop.f32.mrb[0].mxu0
        %1548 = vmatprep.mubr.f32.mxu0 0.0
        %1549 = vmatmul.mubr.f32.gmra.mrb[0].mxu0 %v1421
        %v1550 = vpop.f32.mrb[0].mxu0
        %v1551 = vadd.f32 %v1452, %v1550
        %v1552 = vpop.f32.mrb[0].mxu0
        %1553 = vmatprep.mubr.f32.mxu0 0.0
        %1554 = vmatmul.mubr.f32.gmra.mrb[0].mxu0 %v1422
        %v1555 = vpop.f32.mrb[0].mxu0
        %v1556 = vadd.f32 %v1452, %v1555
        %v1557 = vpop.f32.mrb[0].mxu0
        %1558 = vmatprep.mubr.f32.mxu0 0.0
        %1559 = vmatmul.mubr.f32.gmra.mrb[0].mxu0 %v1423
        %v1560 = vpop.f32.mrb[0].mxu0
        %v1561 = vadd.f32 %v1452, %v1560
        %v1562 = vpop.f32.mrb[0].mxu0
        %1563 = vmatprep.mubr.f32.mxu0 0.0
        %1564 = vmatmul.mubr.f32.gmra.mrb[0].mxu0 %v1424
        %v1565 = vpop.f32.mrb[0].mxu0
        %v1566 = vadd.f32 %v1452, %v1565
        %v1567 = vpop.f32.mrb[0].mxu0
        %1568 = vmatprep.mubr.f32.mxu0 0.0
        %1569 = vmatmul.mubr.f32.gmra.mrb[0].mxu0 %v1425
        %v1570 = vpop.f32.mrb[0].mxu0
        %v1571 = vadd.f32 %v1452, %v1570
        %v1572 = vpop.f32.mrb[0].mxu0
        %1573 = vmatprep.mubr.f32.mxu0 0.0
        %1574 = vmatmul.mubr.f32.gmra.mrb[0].mxu0 %v1426
        %v1575 = vpop.f32.mrb[0].mxu0
        %v1576 = vadd.f32 %v1452, %v1575
        %v1577 = vpop.f32.mrb[0].mxu0
        %1578 = vmatprep.mubr.f32.mxu0 0.0
        %1579 = vmatmul.mubr.f32.gmra.mrb[0].mxu0 %v1427
        %v1580 = vpop.f32.mrb[0].mxu0
        %v1581 = vadd.f32 %v1452, %v1580
        %v1582 = vpop.f32.mrb[0].mxu0
        %1583 = vmatprep.mubr.f32.mxu0 0.0
        %1584 = vmatmul.mubr.f32.gmra.mrb[0].mxu0 %v1428
        %v1585 = vpop.f32.mrb[0].mxu0
        %v1586 = vadd.f32 %v1452, %v1585
        %v1587 = vpop.f32.mrb[0].mxu0
        %1588 = vmatprep.mubr.f32.mxu0 0.0
        %1589 = vmatmul.mubr.f32.gmra.mrb[0].mxu0 %v1429
        %v1590 = vpop.f32.mrb[0].mxu0
        %v1591 = vadd.f32 %v1452, %v1590
        %v1592 = vpop.f32.mrb[0].mxu0
        %1593 = vmatprep.mubr.f32.mxu0 0.0
        %1594 = vmatmul.mubr.f32.gmra.mrb[0].mxu0 %v1430
        %v1595 = vpop.f32.mrb[0].mxu0
        %v1596 = vadd.f32 %v1452, %v1595
        %v1597 = vpop.f32.mrb[0].mxu0
        %1598 = vdwg.mxu0
        %v1599 = vadd.f32 %v437, %v1521
        %v1600 = vadd.f32 %v438, %v1526
        %v1601 = vadd.f32 %v439, %v1531
        %v1602 = vadd.f32 %v440, %v1536
        %v1603 = vadd.f32 %v441, %v1541
        %v1604 = vadd.f32 %v442, %v1546
        %v1605 = vadd.f32 %v443, %v1551
        %v1606 = vadd.f32 %v444, %v1556
        %v1607 = vadd.f32 %v445, %v1561
        %v1608 = vadd.f32 %v446, %v1566
        %v1609 = vadd.f32 %v447, %v1571
        %v1610 = vadd.f32 %v448, %v1576
        %v1611 = vadd.f32 %v449, %v1581
        %v1612 = vadd.f32 %v450, %v1586
        %v1613 = vadd.f32 %v451, %v1591
        %v1614 = vadd.f32 %v452, %v1596
        %1615 = vst [vmem:[%s434] sm:$0xff] %v1599
        %1616 = vst [vmem:[%s434 + $0x8] sm:$0xff] %v1600
        %1617 = vst [vmem:[%s434 + $0x10] sm:$0xff] %v1601
        %1618 = vst [vmem:[%s434 + $0x18] sm:$0xff] %v1602
        %1619 = vst [vmem:[%s434 + $0x20] sm:$0xff] %v1603
        %1620 = vst [vmem:[%s434 + $0x28] sm:$0xff] %v1604
        %1621 = vst [vmem:[%s434 + $0x30] sm:$0xff] %v1605
        %1622 = vst [vmem:[%s434 + $0x38] sm:$0xff] %v1606
        %1623 = vst [vmem:[%s434 + $0x40] sm:$0xff] %v1607
        %1624 = vst [vmem:[%s434 + $0x48] sm:$0xff] %v1608
        %1625 = vst [vmem:[%s434 + $0x50] sm:$0xff] %v1609
        %1626 = vst [vmem:[%s434 + $0x58] sm:$0xff] %v1610
        %1627 = vst [vmem:[%s434 + $0x60] sm:$0xff] %v1611
        %1628 = vst [vmem:[%s434 + $0x68] sm:$0xff] %v1612
        %1629 = vst [vmem:[%s434 + $0x70] sm:$0xff] %v1613
        %1630 = vst [vmem:[%s434 + $0x78] sm:$0xff] %v1614
        %s1631 = sand.u32 %s273, 1
        %s1632 = scalar_lea.sflag [#allocation4], %s1631
        %s1633 = sand.u32 %s273, 1
        %s1634 = smul.addr %s1633, 128
        %s1635 = scalar_lea.vmem [#allocation8], %s1634
        // Predicated region
        $region77: #{tpu_custom_call.1} parent=63 // pred_check
          %p1636 = pneg %p283
        $region78: #{tpu_custom_call.1} parent=63 // pred_check_branch
          %1638 = sbr.rel (%p1636) target = $region80
        $region79: #{tpu_custom_call.1} parent=63 // pred_region
          %s1639 = smul.u32 2, %s29
          %s1641 = ssub.s32 2048, 2048
          %1642 = vsyncadd %s1632, %s1641
          %s1643 = smul.addr %s1639, 8
          %s1644 = smul.addr %s1643, 128
          %s1645 = scalar_lea.hbm %s11, %s1644
          %s1646 = sshll.u32 %s1635, 4
          %s1647 = int_to_ptr.vmem [resolvable:$true] %s1646
          %1652 = dma.vmem_to_hbm [thread:$0]  %s1647, 2048, %s1645, %s1632, 128, 128, 8
        $region80: #{tpu_custom_call.1} parent=63 // pred_fallthru
          _
      $region64: #{tpu_custom_call.1} parent=5 // pred_fallthru
        _
      %p1653 = scmp.le.s32.totalorder 2, %s24
      // Predicated region
      $region81: #{tpu_custom_call.1} parent=5 // pred_check
        %p1654 = pneg %p1653
      $region82: #{tpu_custom_call.1} parent=5 // pred_check_branch
        %1656 = sbr.rel (%p1654) target = $region84
      $region83: #{tpu_custom_call.1} parent=5 // pred_region
        %s1657 = ssub.s32 %s24, 2
        // Predicated region
        $region85: #{tpu_custom_call.1} parent=83 // pred_check
          %p1658 = pneg %p289
        $region86: #{tpu_custom_call.1} parent=83 // pred_check_branch
          %1660 = sbr.rel (%p1658) target = $region88
        $region87: #{tpu_custom_call.1} parent=83 // pred_region
          %s1661 = sand.u32 %s274, 1
          %s1662 = scalar_lea.sflag [#allocation4], %s1661
          %s1663 = sand.u32 %s274, 1
          %s1664 = smul.addr %s1663, 128
          %s1665 = scalar_lea.vmem [#allocation8], %s1664
          %1666 = dma.done %s1662, 2048
        $region88: #{tpu_custom_call.1} parent=83 // pred_fallthru
          _
      $region84: #{tpu_custom_call.1} parent=5 // pred_fallthru
        _
    $region6: #{tpu_custom_call.1} parent=1 // loop_footer
      %s28 = sadd.s32 1, %s24
    $region7: #{tpu_custom_call.1} parent=1 // loop_footer_branch
      %23 = sbr.rel target = $region3
    $region8: #{tpu_custom_call.1} parent=1 // loop_exit
      _
    %1667 = vsyncpa [#allocation3], 1
    %s1668 = scalar_lea.sflag [#allocation3], 1
    %1669 = vsyncpa %s1668, 1
    %1670 = vsyncpa [#allocation6], 1
    %1671 = vsyncpa [#allocation4], 1
    %s1672 = scalar_lea.sflag [#allocation4], 1
    %1673 = vsyncpa %s1672, 1

</llo_original>
